<compile_context>
chip_gen: v7x
topology: tpu7x:2x2x1
jax: 0.10.0
libtpu: 0.0.40
codegen_flags: <defaults>
</compile_context>

<pallas_src>
import functools

import jax
import jax.numpy as jnp
from jax.experimental import pallas as pl
from jax.experimental.pallas import tpu as pltpu


def _attention_layer(x, adj, w, a1, a2, alpha, apply_relu):
    """One GraphAttentionLayer applied to a single batch element.

    x: (N, C) f32, adj: (N, N) f32, w: (C, F) f32, a1/a2: (1, F) f32.
    """
    h = jnp.dot(x, w, preferred_element_type=jnp.float32)          # (N, F)  MXU
    # e[i, j] = leakyrelu(f1[i] + f2[j])  -- decomposition of a_input @ a
    f1 = jnp.sum(h * a1, axis=-1, keepdims=True)                   # (N, 1)  VPU/XLU
    f2 = jnp.sum(h * a2, axis=-1, keepdims=True)                   # (N, 1)
    e = f1 + f2.T                                                  # (N, N)
    e = jnp.where(e > 0, e, alpha * e)                             # LeakyReLU(alpha)
    e = jnp.where(adj > 0, e, jnp.float32(-1e12))                  # mask non-edges
    # row softmax over neighbours j
    m = jnp.max(e, axis=-1, keepdims=True)
    p = jnp.exp(e - m)
    attn = p / jnp.sum(p, axis=-1, keepdims=True)
    hp = jnp.dot(attn, h, preferred_element_type=jnp.float32)      # (N, F)  MXU
    if apply_relu:
        hp = jnp.maximum(hp, 0.0)
    return hp


def gat_kernel(x_ref, adj_ref, ws_ref, a1s_ref, a2s_ref,
               wo_ref, a1o_ref, a2o_ref, o_ref, *, n_heads, alpha):
    x = x_ref[0]                                                   # (N, C)
    adj = adj_ref[0]                                               # (N, N)

    heads = []
    for hd in range(n_heads):                                      # static unroll
        heads.append(
            _attention_layer(x, adj, ws_ref[hd], a1s_ref[hd], a2s_ref[hd],
                             alpha, apply_relu=True))
    hcat = jnp.concatenate(heads, axis=-1)                         # (N, H*F)

    # Output attention layer (concat=False) + ELU + log_softmax over features.
    y = _attention_layer(hcat, adj, wo_ref[...], a1o_ref[...], a2o_ref[...],
                         alpha, apply_relu=False)                  # (N, F)
    y = jnp.where(y > 0, y, jnp.exp(jnp.minimum(y, 0.0)) - 1.0)    # ELU
    m = jnp.max(y, axis=-1, keepdims=True)
    z = y - m
    lse = jnp.log(jnp.sum(jnp.exp(z), axis=-1, keepdims=True))
    o_ref[0] = (z - lse).astype(o_ref.dtype)                       # log_softmax


def gat_forward(x, adj, Ws, As, Wo, Ao, *, alpha):
    """x: (B, N, C); adj: (B, N, N); Ws: (H, C, F); As: (H, 2F, 1);
    Wo: (H*F, F); Ao: (2F, 1)."""
    B, N, C = x.shape
    H, _, F = Ws.shape
    HF = H * F
    # Split/reshape the `a` vectors outside the kernel so the kernel sees
    # lane-major (1, F) rows (no lane-width-1 operands).
    a1s = jnp.swapaxes(As[:, :F, :], 1, 2)                         # (H, 1, F)
    a2s = jnp.swapaxes(As[:, F:, :], 1, 2)                         # (H, 1, F)
    a1o = jnp.swapaxes(Ao[:F, :], 0, 1)                            # (1, F)
    a2o = jnp.swapaxes(Ao[F:, :], 0, 1)                            # (1, F)

    kernel = functools.partial(gat_kernel, n_heads=H, alpha=alpha)

    return pl.pallas_call(
        kernel,
        out_shape=jax.ShapeDtypeStruct((B, N, F), jnp.float32),
        grid_spec=pltpu.PrefetchScalarGridSpec(
            num_scalar_prefetch=0,
            grid=(B,),
            in_specs=[
                pl.BlockSpec((1, N, C), lambda b: (b, 0, 0)),      # x   (per batch)
                pl.BlockSpec((1, N, N), lambda b: (b, 0, 0)),      # adj (per batch)
                pl.BlockSpec((H, C, F), lambda b: (0, 0, 0)),      # head weights
                pl.BlockSpec((H, 1, F), lambda b: (0, 0, 0)),      # head a1
                pl.BlockSpec((H, 1, F), lambda b: (0, 0, 0)),      # head a2
                pl.BlockSpec((HF, F), lambda b: (0, 0)),           # out weight
                pl.BlockSpec((1, F), lambda b: (0, 0)),            # out a1
                pl.BlockSpec((1, F), lambda b: (0, 0)),            # out a2
            ],
            out_specs=pl.BlockSpec((1, N, F), lambda b: (b, 0, 0)),
        ),
        compiler_params=pltpu.CompilerParams(
            dimension_semantics=("parallel",)),
    )(x, adj, Ws, a1s, a2s, Wo, a1o, a2o)


def gat_ref(x, adj, Ws, As, Wo, Ao, alpha):
    """Pure-JAX reference mirroring the PyTorch forward (eval mode)."""
    def layer(xin, W, a, concat):
        B, N, _ = xin.shape
        Fo = W.shape[1]
        h = jnp.einsum("bnc,cf->bnf", xin, W)
        a_in = jnp.concatenate(
            [jnp.broadcast_to(h[:, :, None, :], (B, N, N, Fo)),
             jnp.broadcast_to(h[:, None, :, :], (B, N, N, Fo))], axis=-1)
        e = jnp.einsum("bijk,kl->bijl", a_in, a)[..., 0]
        e = jnp.where(e > 0, e, alpha * e)
        att = jnp.where(adj > 0, e, -1e12)
        att = jax.nn.softmax(att, axis=2)
        hp = jnp.einsum("bij,bjf->bif", att, h)
        return jnp.maximum(hp, 0.0) if concat else hp

    heads = [layer(x, Ws[i], As[i], True) for i in range(Ws.shape[0])]
    xc = jnp.concatenate(heads, axis=-1)
    y = layer(xc, Wo, Ao, False)
    y = jax.nn.elu(y)
    return jax.nn.log_softmax(y, axis=2)


if __name__ == "__main__":
    B, N, Cin, Fout, H = 2, 8, 16, 8, 4
    alpha = 0.2

    key = jax.random.PRNGKey(0)
    kx, ka, kw, kah, kwo, kao = jax.random.split(key, 6)

    x = jax.random.normal(kx, (B, N, Cin), dtype=jnp.float32)
    adj = (jax.random.uniform(ka, (B, N, N)) > 0.5).astype(jnp.float32)
    adj = jnp.maximum(adj, jnp.eye(N, dtype=jnp.float32)[None])     # self loops

    Ws = 0.5 * jax.random.normal(kw, (H, Cin, Fout), dtype=jnp.float32)
    As = 0.5 * jax.random.normal(kah, (H, 2 * Fout, 1), dtype=jnp.float32)
    Wo = 0.5 * jax.random.normal(kwo, (H * Fout, Fout), dtype=jnp.float32)
    Ao = 0.5 * jax.random.normal(kao, (2 * Fout, 1), dtype=jnp.float32)

    out = gat_forward(x, adj, Ws, As, Wo, Ao, alpha=alpha)
    out = jax.block_until_ready(out)

    ref = gat_ref(x, adj, Ws, As, Wo, Ao, alpha)
    assert out.shape == (B, N, Fout)
    assert jnp.allclose(out, ref, atol=1e-4, rtol=1e-4), (
        f"mismatch vs reference, max err={jnp.max(jnp.abs(out - ref))}")

    print("KERNEL_OK")
</pallas_src>

<mosaic_0001>
module attributes {stable_mosaic.version = 11 : i64} {
  func.func @gat_kernel(%arg0: i32, %arg1: memref<1x8x16xf32, #tpu.memory_space<vmem>>, %arg2: memref<1x8x8xf32, #tpu.memory_space<vmem>>, %arg3: memref<4x16x8xf32, #tpu.memory_space<vmem>>, %arg4: memref<4x1x8xf32, #tpu.memory_space<vmem>>, %arg5: memref<4x1x8xf32, #tpu.memory_space<vmem>>, %arg6: memref<32x8xf32, #tpu.memory_space<vmem>>, %arg7: memref<1x8xf32, #tpu.memory_space<vmem>>, %arg8: memref<1x8xf32, #tpu.memory_space<vmem>>, %arg9: memref<1x8x8xf32, #tpu.memory_space<vmem>>) attributes {dimension_semantics = [#tpu.dimension_semantics<parallel>], iteration_bounds = array<i64: 2>, scalar_prefetch = 0 : i64, scratch_operands = 0 : i64, tpu.core_type = #tpu.core_type<tc>, window_params = [{transform_indices = @transform_0, window_bounds = array<i64: 1, 8, 16>}, {transform_indices = @transform_1, window_bounds = array<i64: 1, 8, 8>}, {pipeline_mode = #tpu.pipeline_mode<synchronous>, transform_indices = @transform_2, window_bounds = array<i64: 4, 16, 8>}, {pipeline_mode = #tpu.pipeline_mode<synchronous>, transform_indices = @transform_3, window_bounds = array<i64: 4, 1, 8>}, {pipeline_mode = #tpu.pipeline_mode<synchronous>, transform_indices = @transform_4, window_bounds = array<i64: 4, 1, 8>}, {pipeline_mode = #tpu.pipeline_mode<synchronous>, transform_indices = @transform_5, window_bounds = array<i64: 32, 8>}, {pipeline_mode = #tpu.pipeline_mode<synchronous>, transform_indices = @transform_6, window_bounds = array<i64: 1, 8>}, {pipeline_mode = #tpu.pipeline_mode<synchronous>, transform_indices = @transform_7, window_bounds = array<i64: 1, 8>}, {transform_indices = @transform_8, window_bounds = array<i64: 1, 8, 8>}]} {
    %c0 = arith.constant 0 : index
    %c0_0 = arith.constant 0 : index
    %c0_1 = arith.constant 0 : index
    %0 = vector.load %arg1[%c0, %c0_0, %c0_1] : memref<1x8x16xf32, #tpu.memory_space<vmem>>, vector<1x8x16xf32>
    %1 = vector.shape_cast %0 : vector<1x8x16xf32> to vector<8x16xf32>
    %c0_2 = arith.constant 0 : index
    %c0_3 = arith.constant 0 : index
    %c0_4 = arith.constant 0 : index
    %2 = vector.load %arg2[%c0_2, %c0_3, %c0_4] : memref<1x8x8xf32, #tpu.memory_space<vmem>>, vector<1x8x8xf32>
    %3 = vector.shape_cast %2 : vector<1x8x8xf32> to vector<8x8xf32>
    %c0_5 = arith.constant 0 : index
    %c0_6 = arith.constant 0 : index
    %c0_7 = arith.constant 0 : index
    %4 = vector.load %arg3[%c0_5, %c0_6, %c0_7] : memref<4x16x8xf32, #tpu.memory_space<vmem>>, vector<1x16x8xf32>
    %5 = vector.shape_cast %4 : vector<1x16x8xf32> to vector<16x8xf32>
    %c0_8 = arith.constant 0 : index
    %c0_9 = arith.constant 0 : index
    %c0_10 = arith.constant 0 : index
    %6 = vector.load %arg4[%c0_8, %c0_9, %c0_10] : memref<4x1x8xf32, #tpu.memory_space<vmem>>, vector<1x1x8xf32>
    %7 = vector.shape_cast %6 : vector<1x1x8xf32> to vector<1x8xf32>
    %c0_11 = arith.constant 0 : index
    %c0_12 = arith.constant 0 : index
    %c0_13 = arith.constant 0 : index
    %8 = vector.load %arg5[%c0_11, %c0_12, %c0_13] : memref<4x1x8xf32, #tpu.memory_space<vmem>>, vector<1x1x8xf32>
    %9 = vector.shape_cast %8 : vector<1x1x8xf32> to vector<1x8xf32>
    %cst = arith.constant dense<0.000000e+00> : vector<8x8xf32>
    %10 = tpu.matmul %1, %5, %cst {dimension_numbers = #tpu.dot_dimension_numbers<[1], [0], [0], [1], [0, 0, 1, 1], [], []>} : vector<8x16xf32>, vector<16x8xf32>, vector<8x8xf32> -> vector<8x8xf32>
    %11 = vector.broadcast %7 : vector<1x8xf32> to vector<8x8xf32>
    %12 = arith.mulf %10, %11 : vector<8x8xf32>
    %cst_14 = arith.constant dense<0.000000e+00> : vector<8xf32>
    %13 = vector.multi_reduction <add>, %12, %cst_14 [1] : vector<8x8xf32> to vector<8xf32>
    %14 = vector.shape_cast %13 : vector<8xf32> to vector<8x1xf32>
    %15 = vector.broadcast %9 : vector<1x8xf32> to vector<8x8xf32>
    %16 = arith.mulf %10, %15 : vector<8x8xf32>
    %cst_15 = arith.constant dense<0.000000e+00> : vector<8xf32>
    %17 = vector.multi_reduction <add>, %16, %cst_15 [1] : vector<8x8xf32> to vector<8xf32>
    %18 = vector.shape_cast %17 : vector<8xf32> to vector<8x1xf32>
    %19 = tpu.transpose %18, [1, 0] : vector<8x1xf32> -> vector<1x8xf32>
    %20 = vector.broadcast %14 : vector<8x1xf32> to vector<8x8xf32>
    %21 = vector.broadcast %19 : vector<1x8xf32> to vector<8x8xf32>
    %22 = arith.addf %20, %21 : vector<8x8xf32>
    %cst_16 = arith.constant 0.000000e+00 : f32
    %23 = vector.broadcast %cst_16 : f32 to vector<8x8xf32>
    %24 = arith.cmpf ogt, %22, %23 : vector<8x8xf32>
    %cst_17 = arith.constant 2.000000e-01 : f32
    %25 = vector.broadcast %cst_17 : f32 to vector<8x8xf32>
    %26 = arith.mulf %25, %22 : vector<8x8xf32>
    %27 = arith.select %24, %22, %26 : vector<8x8xi1>, vector<8x8xf32>
    %cst_18 = arith.constant 0.000000e+00 : f32
    %28 = vector.broadcast %cst_18 : f32 to vector<8x8xf32>
    %29 = arith.cmpf ogt, %3, %28 : vector<8x8xf32>
    %cst_19 = arith.constant -9.99999995E+11 : f32
    %30 = vector.broadcast %cst_19 : f32 to vector<8x8xf32>
    %31 = arith.select %29, %27, %30 : vector<8x8xi1>, vector<8x8xf32>
    %cst_20 = arith.constant dense<0xFF800000> : vector<8xf32>
    %32 = vector.multi_reduction <maximumf>, %31, %cst_20 [1] : vector<8x8xf32> to vector<8xf32>
    %33 = vector.shape_cast %32 : vector<8xf32> to vector<8x1xf32>
    %34 = vector.broadcast %33 : vector<8x1xf32> to vector<8x8xf32>
    %35 = arith.subf %31, %34 : vector<8x8xf32>
    %36 = math.exp %35 : vector<8x8xf32>
    %cst_21 = arith.constant dense<0.000000e+00> : vector<8xf32>
    %37 = vector.multi_reduction <add>, %36, %cst_21 [1] : vector<8x8xf32> to vector<8xf32>
    %38 = vector.shape_cast %37 : vector<8xf32> to vector<8x1xf32>
    %39 = vector.broadcast %38 : vector<8x1xf32> to vector<8x8xf32>
    %40 = arith.divf %36, %39 : vector<8x8xf32>
    %cst_22 = arith.constant dense<0.000000e+00> : vector<8x8xf32>
    %41 = tpu.matmul %40, %10, %cst_22 {dimension_numbers = #tpu.dot_dimension_numbers<[1], [0], [0], [1], [0, 0, 1, 1], [], []>} : vector<8x8xf32>, vector<8x8xf32>, vector<8x8xf32> -> vector<8x8xf32>
    %cst_23 = arith.constant 0.000000e+00 : f32
    %42 = vector.broadcast %cst_23 : f32 to vector<8x8xf32>
    %43 = arith.maximumf %41, %42 : vector<8x8xf32>
    %c1 = arith.constant 1 : index
    %c0_24 = arith.constant 0 : index
    %c0_25 = arith.constant 0 : index
    %44 = vector.load %arg3[%c1, %c0_24, %c0_25] : memref<4x16x8xf32, #tpu.memory_space<vmem>>, vector<1x16x8xf32>
    %45 = vector.shape_cast %44 : vector<1x16x8xf32> to vector<16x8xf32>
    %c1_26 = arith.constant 1 : index
    %c0_27 = arith.constant 0 : index
    %c0_28 = arith.constant 0 : index
    %46 = vector.load %arg4[%c1_26, %c0_27, %c0_28] : memref<4x1x8xf32, #tpu.memory_space<vmem>>, vector<1x1x8xf32>
    %47 = vector.shape_cast %46 : vector<1x1x8xf32> to vector<1x8xf32>
    %c1_29 = arith.constant 1 : index
    %c0_30 = arith.constant 0 : index
    %c0_31 = arith.constant 0 : index
    %48 = vector.load %arg5[%c1_29, %c0_30, %c0_31] : memref<4x1x8xf32, #tpu.memory_space<vmem>>, vector<1x1x8xf32>
    %49 = vector.shape_cast %48 : vector<1x1x8xf32> to vector<1x8xf32>
    %cst_32 = arith.constant dense<0.000000e+00> : vector<8x8xf32>
    %50 = tpu.matmul %1, %45, %cst_32 {dimension_numbers = #tpu.dot_dimension_numbers<[1], [0], [0], [1], [0, 0, 1, 1], [], []>} : vector<8x16xf32>, vector<16x8xf32>, vector<8x8xf32> -> vector<8x8xf32>
    %51 = vector.broadcast %47 : vector<1x8xf32> to vector<8x8xf32>
    %52 = arith.mulf %50, %51 : vector<8x8xf32>
    %cst_33 = arith.constant dense<0.000000e+00> : vector<8xf32>
    %53 = vector.multi_reduction <add>, %52, %cst_33 [1] : vector<8x8xf32> to vector<8xf32>
    %54 = vector.shape_cast %53 : vector<8xf32> to vector<8x1xf32>
    %55 = vector.broadcast %49 : vector<1x8xf32> to vector<8x8xf32>
    %56 = arith.mulf %50, %55 : vector<8x8xf32>
    %cst_34 = arith.constant dense<0.000000e+00> : vector<8xf32>
    %57 = vector.multi_reduction <add>, %56, %cst_34 [1] : vector<8x8xf32> to vector<8xf32>
    %58 = vector.shape_cast %57 : vector<8xf32> to vector<8x1xf32>
    %59 = tpu.transpose %58, [1, 0] : vector<8x1xf32> -> vector<1x8xf32>
    %60 = vector.broadcast %54 : vector<8x1xf32> to vector<8x8xf32>
    %61 = vector.broadcast %59 : vector<1x8xf32> to vector<8x8xf32>
    %62 = arith.addf %60, %61 : vector<8x8xf32>
    %cst_35 = arith.constant 0.000000e+00 : f32
    %63 = vector.broadcast %cst_35 : f32 to vector<8x8xf32>
    %64 = arith.cmpf ogt, %62, %63 : vector<8x8xf32>
    %cst_36 = arith.constant 2.000000e-01 : f32
    %65 = vector.broadcast %cst_36 : f32 to vector<8x8xf32>
    %66 = arith.mulf %65, %62 : vector<8x8xf32>
    %67 = arith.select %64, %62, %66 : vector<8x8xi1>, vector<8x8xf32>
    %cst_37 = arith.constant 0.000000e+00 : f32
    %68 = vector.broadcast %cst_37 : f32 to vector<8x8xf32>
    %69 = arith.cmpf ogt, %3, %68 : vector<8x8xf32>
    %cst_38 = arith.constant -9.99999995E+11 : f32
    %70 = vector.broadcast %cst_38 : f32 to vector<8x8xf32>
    %71 = arith.select %69, %67, %70 : vector<8x8xi1>, vector<8x8xf32>
    %cst_39 = arith.constant dense<0xFF800000> : vector<8xf32>
    %72 = vector.multi_reduction <maximumf>, %71, %cst_39 [1] : vector<8x8xf32> to vector<8xf32>
    %73 = vector.shape_cast %72 : vector<8xf32> to vector<8x1xf32>
    %74 = vector.broadcast %73 : vector<8x1xf32> to vector<8x8xf32>
    %75 = arith.subf %71, %74 : vector<8x8xf32>
    %76 = math.exp %75 : vector<8x8xf32>
    %cst_40 = arith.constant dense<0.000000e+00> : vector<8xf32>
    %77 = vector.multi_reduction <add>, %76, %cst_40 [1] : vector<8x8xf32> to vector<8xf32>
    %78 = vector.shape_cast %77 : vector<8xf32> to vector<8x1xf32>
    %79 = vector.broadcast %78 : vector<8x1xf32> to vector<8x8xf32>
    %80 = arith.divf %76, %79 : vector<8x8xf32>
    %cst_41 = arith.constant dense<0.000000e+00> : vector<8x8xf32>
    %81 = tpu.matmul %80, %50, %cst_41 {dimension_numbers = #tpu.dot_dimension_numbers<[1], [0], [0], [1], [0, 0, 1, 1], [], []>} : vector<8x8xf32>, vector<8x8xf32>, vector<8x8xf32> -> vector<8x8xf32>
    %cst_42 = arith.constant 0.000000e+00 : f32
    %82 = vector.broadcast %cst_42 : f32 to vector<8x8xf32>
    %83 = arith.maximumf %81, %82 : vector<8x8xf32>
    %c2 = arith.constant 2 : index
    %c0_43 = arith.constant 0 : index
    %c0_44 = arith.constant 0 : index
    %84 = vector.load %arg3[%c2, %c0_43, %c0_44] : memref<4x16x8xf32, #tpu.memory_space<vmem>>, vector<1x16x8xf32>
    %85 = vector.shape_cast %84 : vector<1x16x8xf32> to vector<16x8xf32>
    %c2_45 = arith.constant 2 : index
    %c0_46 = arith.constant 0 : index
    %c0_47 = arith.constant 0 : index
    %86 = vector.load %arg4[%c2_45, %c0_46, %c0_47] : memref<4x1x8xf32, #tpu.memory_space<vmem>>, vector<1x1x8xf32>
    %87 = vector.shape_cast %86 : vector<1x1x8xf32> to vector<1x8xf32>
    %c2_48 = arith.constant 2 : index
    %c0_49 = arith.constant 0 : index
    %c0_50 = arith.constant 0 : index
    %88 = vector.load %arg5[%c2_48, %c0_49, %c0_50] : memref<4x1x8xf32, #tpu.memory_space<vmem>>, vector<1x1x8xf32>
    %89 = vector.shape_cast %88 : vector<1x1x8xf32> to vector<1x8xf32>
    %cst_51 = arith.constant dense<0.000000e+00> : vector<8x8xf32>
    %90 = tpu.matmul %1, %85, %cst_51 {dimension_numbers = #tpu.dot_dimension_numbers<[1], [0], [0], [1], [0, 0, 1, 1], [], []>} : vector<8x16xf32>, vector<16x8xf32>, vector<8x8xf32> -> vector<8x8xf32>
    %91 = vector.broadcast %87 : vector<1x8xf32> to vector<8x8xf32>
    %92 = arith.mulf %90, %91 : vector<8x8xf32>
    %cst_52 = arith.constant dense<0.000000e+00> : vector<8xf32>
    %93 = vector.multi_reduction <add>, %92, %cst_52 [1] : vector<8x8xf32> to vector<8xf32>
    %94 = vector.shape_cast %93 : vector<8xf32> to vector<8x1xf32>
    %95 = vector.broadcast %89 : vector<1x8xf32> to vector<8x8xf32>
    %96 = arith.mulf %90, %95 : vector<8x8xf32>
    %cst_53 = arith.constant dense<0.000000e+00> : vector<8xf32>
    %97 = vector.multi_reduction <add>, %96, %cst_53 [1] : vector<8x8xf32> to vector<8xf32>
    %98 = vector.shape_cast %97 : vector<8xf32> to vector<8x1xf32>
    %99 = tpu.transpose %98, [1, 0] : vector<8x1xf32> -> vector<1x8xf32>
    %100 = vector.broadcast %94 : vector<8x1xf32> to vector<8x8xf32>
    %101 = vector.broadcast %99 : vector<1x8xf32> to vector<8x8xf32>
    %102 = arith.addf %100, %101 : vector<8x8xf32>
    %cst_54 = arith.constant 0.000000e+00 : f32
    %103 = vector.broadcast %cst_54 : f32 to vector<8x8xf32>
    %104 = arith.cmpf ogt, %102, %103 : vector<8x8xf32>
    %cst_55 = arith.constant 2.000000e-01 : f32
    %105 = vector.broadcast %cst_55 : f32 to vector<8x8xf32>
    %106 = arith.mulf %105, %102 : vector<8x8xf32>
    %107 = arith.select %104, %102, %106 : vector<8x8xi1>, vector<8x8xf32>
    %cst_56 = arith.constant 0.000000e+00 : f32
    %108 = vector.broadcast %cst_56 : f32 to vector<8x8xf32>
    %109 = arith.cmpf ogt, %3, %108 : vector<8x8xf32>
    %cst_57 = arith.constant -9.99999995E+11 : f32
    %110 = vector.broadcast %cst_57 : f32 to vector<8x8xf32>
    %111 = arith.select %109, %107, %110 : vector<8x8xi1>, vector<8x8xf32>
    %cst_58 = arith.constant dense<0xFF800000> : vector<8xf32>
    %112 = vector.multi_reduction <maximumf>, %111, %cst_58 [1] : vector<8x8xf32> to vector<8xf32>
    %113 = vector.shape_cast %112 : vector<8xf32> to vector<8x1xf32>
    %114 = vector.broadcast %113 : vector<8x1xf32> to vector<8x8xf32>
    %115 = arith.subf %111, %114 : vector<8x8xf32>
    %116 = math.exp %115 : vector<8x8xf32>
    %cst_59 = arith.constant dense<0.000000e+00> : vector<8xf32>
    %117 = vector.multi_reduction <add>, %116, %cst_59 [1] : vector<8x8xf32> to vector<8xf32>
    %118 = vector.shape_cast %117 : vector<8xf32> to vector<8x1xf32>
    %119 = vector.broadcast %118 : vector<8x1xf32> to vector<8x8xf32>
    %120 = arith.divf %116, %119 : vector<8x8xf32>
    %cst_60 = arith.constant dense<0.000000e+00> : vector<8x8xf32>
    %121 = tpu.matmul %120, %90, %cst_60 {dimension_numbers = #tpu.dot_dimension_numbers<[1], [0], [0], [1], [0, 0, 1, 1], [], []>} : vector<8x8xf32>, vector<8x8xf32>, vector<8x8xf32> -> vector<8x8xf32>
    %cst_61 = arith.constant 0.000000e+00 : f32
    %122 = vector.broadcast %cst_61 : f32 to vector<8x8xf32>
    %123 = arith.maximumf %121, %122 : vector<8x8xf32>
    %c3 = arith.constant 3 : index
    %c0_62 = arith.constant 0 : index
    %c0_63 = arith.constant 0 : index
    %124 = vector.load %arg3[%c3, %c0_62, %c0_63] : memref<4x16x8xf32, #tpu.memory_space<vmem>>, vector<1x16x8xf32>
    %125 = vector.shape_cast %124 : vector<1x16x8xf32> to vector<16x8xf32>
    %c3_64 = arith.constant 3 : index
    %c0_65 = arith.constant 0 : index
    %c0_66 = arith.constant 0 : index
    %126 = vector.load %arg4[%c3_64, %c0_65, %c0_66] : memref<4x1x8xf32, #tpu.memory_space<vmem>>, vector<1x1x8xf32>
    %127 = vector.shape_cast %126 : vector<1x1x8xf32> to vector<1x8xf32>
    %c3_67 = arith.constant 3 : index
    %c0_68 = arith.constant 0 : index
    %c0_69 = arith.constant 0 : index
    %128 = vector.load %arg5[%c3_67, %c0_68, %c0_69] : memref<4x1x8xf32, #tpu.memory_space<vmem>>, vector<1x1x8xf32>
    %129 = vector.shape_cast %128 : vector<1x1x8xf32> to vector<1x8xf32>
    %cst_70 = arith.constant dense<0.000000e+00> : vector<8x8xf32>
    %130 = tpu.matmul %1, %125, %cst_70 {dimension_numbers = #tpu.dot_dimension_numbers<[1], [0], [0], [1], [0, 0, 1, 1], [], []>} : vector<8x16xf32>, vector<16x8xf32>, vector<8x8xf32> -> vector<8x8xf32>
    %131 = vector.broadcast %127 : vector<1x8xf32> to vector<8x8xf32>
    %132 = arith.mulf %130, %131 : vector<8x8xf32>
    %cst_71 = arith.constant dense<0.000000e+00> : vector<8xf32>
    %133 = vector.multi_reduction <add>, %132, %cst_71 [1] : vector<8x8xf32> to vector<8xf32>
    %134 = vector.shape_cast %133 : vector<8xf32> to vector<8x1xf32>
    %135 = vector.broadcast %129 : vector<1x8xf32> to vector<8x8xf32>
    %136 = arith.mulf %130, %135 : vector<8x8xf32>
    %cst_72 = arith.constant dense<0.000000e+00> : vector<8xf32>
    %137 = vector.multi_reduction <add>, %136, %cst_72 [1] : vector<8x8xf32> to vector<8xf32>
    %138 = vector.shape_cast %137 : vector<8xf32> to vector<8x1xf32>
    %139 = tpu.transpose %138, [1, 0] : vector<8x1xf32> -> vector<1x8xf32>
    %140 = vector.broadcast %134 : vector<8x1xf32> to vector<8x8xf32>
    %141 = vector.broadcast %139 : vector<1x8xf32> to vector<8x8xf32>
    %142 = arith.addf %140, %141 : vector<8x8xf32>
    %cst_73 = arith.constant 0.000000e+00 : f32
    %143 = vector.broadcast %cst_73 : f32 to vector<8x8xf32>
    %144 = arith.cmpf ogt, %142, %143 : vector<8x8xf32>
    %cst_74 = arith.constant 2.000000e-01 : f32
    %145 = vector.broadcast %cst_74 : f32 to vector<8x8xf32>
    %146 = arith.mulf %145, %142 : vector<8x8xf32>
    %147 = arith.select %144, %142, %146 : vector<8x8xi1>, vector<8x8xf32>
    %cst_75 = arith.constant 0.000000e+00 : f32
    %148 = vector.broadcast %cst_75 : f32 to vector<8x8xf32>
    %149 = arith.cmpf ogt, %3, %148 : vector<8x8xf32>
    %cst_76 = arith.constant -9.99999995E+11 : f32
    %150 = vector.broadcast %cst_76 : f32 to vector<8x8xf32>
    %151 = arith.select %149, %147, %150 : vector<8x8xi1>, vector<8x8xf32>
    %cst_77 = arith.constant dense<0xFF800000> : vector<8xf32>
    %152 = vector.multi_reduction <maximumf>, %151, %cst_77 [1] : vector<8x8xf32> to vector<8xf32>
    %153 = vector.shape_cast %152 : vector<8xf32> to vector<8x1xf32>
    %154 = vector.broadcast %153 : vector<8x1xf32> to vector<8x8xf32>
    %155 = arith.subf %151, %154 : vector<8x8xf32>
    %156 = math.exp %155 : vector<8x8xf32>
    %cst_78 = arith.constant dense<0.000000e+00> : vector<8xf32>
    %157 = vector.multi_reduction <add>, %156, %cst_78 [1] : vector<8x8xf32> to vector<8xf32>
    %158 = vector.shape_cast %157 : vector<8xf32> to vector<8x1xf32>
    %159 = vector.broadcast %158 : vector<8x1xf32> to vector<8x8xf32>
    %160 = arith.divf %156, %159 : vector<8x8xf32>
    %cst_79 = arith.constant dense<0.000000e+00> : vector<8x8xf32>
    %161 = tpu.matmul %160, %130, %cst_79 {dimension_numbers = #tpu.dot_dimension_numbers<[1], [0], [0], [1], [0, 0, 1, 1], [], []>} : vector<8x8xf32>, vector<8x8xf32>, vector<8x8xf32> -> vector<8x8xf32>
    %cst_80 = arith.constant 0.000000e+00 : f32
    %162 = vector.broadcast %cst_80 : f32 to vector<8x8xf32>
    %163 = arith.maximumf %161, %162 : vector<8x8xf32>
    %164 = tpu.concatenate %43, %83, %123, %163 in 1 : vector<8x8xf32>, vector<8x8xf32>, vector<8x8xf32>, vector<8x8xf32> -> vector<8x32xf32>
    %c0_81 = arith.constant 0 : index
    %c0_82 = arith.constant 0 : index
    %165 = vector.load %arg6[%c0_81, %c0_82] : memref<32x8xf32, #tpu.memory_space<vmem>>, vector<32x8xf32>
    %c0_83 = arith.constant 0 : index
    %c0_84 = arith.constant 0 : index
    %166 = vector.load %arg7[%c0_83, %c0_84] : memref<1x8xf32, #tpu.memory_space<vmem>>, vector<1x8xf32>
    %c0_85 = arith.constant 0 : index
    %c0_86 = arith.constant 0 : index
    %167 = vector.load %arg8[%c0_85, %c0_86] : memref<1x8xf32, #tpu.memory_space<vmem>>, vector<1x8xf32>
    %cst_87 = arith.constant dense<0.000000e+00> : vector<8x8xf32>
    %168 = tpu.matmul %164, %165, %cst_87 {dimension_numbers = #tpu.dot_dimension_numbers<[1], [0], [0], [1], [0, 0, 1, 1], [], []>} : vector<8x32xf32>, vector<32x8xf32>, vector<8x8xf32> -> vector<8x8xf32>
    %169 = vector.broadcast %166 : vector<1x8xf32> to vector<8x8xf32>
    %170 = arith.mulf %168, %169 : vector<8x8xf32>
    %cst_88 = arith.constant dense<0.000000e+00> : vector<8xf32>
    %171 = vector.multi_reduction <add>, %170, %cst_88 [1] : vector<8x8xf32> to vector<8xf32>
    %172 = vector.shape_cast %171 : vector<8xf32> to vector<8x1xf32>
    %173 = vector.broadcast %167 : vector<1x8xf32> to vector<8x8xf32>
    %174 = arith.mulf %168, %173 : vector<8x8xf32>
    %cst_89 = arith.constant dense<0.000000e+00> : vector<8xf32>
    %175 = vector.multi_reduction <add>, %174, %cst_89 [1] : vector<8x8xf32> to vector<8xf32>
    %176 = vector.shape_cast %175 : vector<8xf32> to vector<8x1xf32>
    %177 = tpu.transpose %176, [1, 0] : vector<8x1xf32> -> vector<1x8xf32>
    %178 = vector.broadcast %172 : vector<8x1xf32> to vector<8x8xf32>
    %179 = vector.broadcast %177 : vector<1x8xf32> to vector<8x8xf32>
    %180 = arith.addf %178, %179 : vector<8x8xf32>
    %cst_90 = arith.constant 0.000000e+00 : f32
    %181 = vector.broadcast %cst_90 : f32 to vector<8x8xf32>
    %182 = arith.cmpf ogt, %180, %181 : vector<8x8xf32>
    %cst_91 = arith.constant 2.000000e-01 : f32
    %183 = vector.broadcast %cst_91 : f32 to vector<8x8xf32>
    %184 = arith.mulf %183, %180 : vector<8x8xf32>
    %185 = arith.select %182, %180, %184 : vector<8x8xi1>, vector<8x8xf32>
    %cst_92 = arith.constant 0.000000e+00 : f32
    %186 = vector.broadcast %cst_92 : f32 to vector<8x8xf32>
    %187 = arith.cmpf ogt, %3, %186 : vector<8x8xf32>
    %cst_93 = arith.constant -9.99999995E+11 : f32
    %188 = vector.broadcast %cst_93 : f32 to vector<8x8xf32>
    %189 = arith.select %187, %185, %188 : vector<8x8xi1>, vector<8x8xf32>
    %cst_94 = arith.constant dense<0xFF800000> : vector<8xf32>
    %190 = vector.multi_reduction <maximumf>, %189, %cst_94 [1] : vector<8x8xf32> to vector<8xf32>
    %191 = vector.shape_cast %190 : vector<8xf32> to vector<8x1xf32>
    %192 = vector.broadcast %191 : vector<8x1xf32> to vector<8x8xf32>
    %193 = arith.subf %189, %192 : vector<8x8xf32>
    %194 = math.exp %193 : vector<8x8xf32>
    %cst_95 = arith.constant dense<0.000000e+00> : vector<8xf32>
    %195 = vector.multi_reduction <add>, %194, %cst_95 [1] : vector<8x8xf32> to vector<8xf32>
    %196 = vector.shape_cast %195 : vector<8xf32> to vector<8x1xf32>
    %197 = vector.broadcast %196 : vector<8x1xf32> to vector<8x8xf32>
    %198 = arith.divf %194, %197 : vector<8x8xf32>
    %cst_96 = arith.constant dense<0.000000e+00> : vector<8x8xf32>
    %199 = tpu.matmul %198, %168, %cst_96 {dimension_numbers = #tpu.dot_dimension_numbers<[1], [0], [0], [1], [0, 0, 1, 1], [], []>} : vector<8x8xf32>, vector<8x8xf32>, vector<8x8xf32> -> vector<8x8xf32>
    %cst_97 = arith.constant 0.000000e+00 : f32
    %200 = vector.broadcast %cst_97 : f32 to vector<8x8xf32>
    %201 = arith.cmpf ogt, %199, %200 : vector<8x8xf32>
    %cst_98 = arith.constant 0.000000e+00 : f32
    %202 = vector.broadcast %cst_98 : f32 to vector<8x8xf32>
    %203 = arith.minimumf %199, %202 : vector<8x8xf32>
    %204 = math.exp %203 : vector<8x8xf32>
    %cst_99 = arith.constant 1.000000e+00 : f32
    %205 = vector.broadcast %cst_99 : f32 to vector<8x8xf32>
    %206 = arith.subf %204, %205 : vector<8x8xf32>
    %207 = arith.select %201, %199, %206 : vector<8x8xi1>, vector<8x8xf32>
    %cst_100 = arith.constant dense<0xFF800000> : vector<8xf32>
    %208 = vector.multi_reduction <maximumf>, %207, %cst_100 [1] : vector<8x8xf32> to vector<8xf32>
    %209 = vector.shape_cast %208 : vector<8xf32> to vector<8x1xf32>
    %210 = vector.broadcast %209 : vector<8x1xf32> to vector<8x8xf32>
    %211 = arith.subf %207, %210 : vector<8x8xf32>
    %212 = math.exp %211 : vector<8x8xf32>
    %cst_101 = arith.constant dense<0.000000e+00> : vector<8xf32>
    %213 = vector.multi_reduction <add>, %212, %cst_101 [1] : vector<8x8xf32> to vector<8xf32>
    %214 = vector.shape_cast %213 : vector<8xf32> to vector<8x1xf32>
    %215 = math.log %214 : vector<8x1xf32>
    %216 = vector.broadcast %215 : vector<8x1xf32> to vector<8x8xf32>
    %217 = arith.subf %211, %216 : vector<8x8xf32>
    %c0_102 = arith.constant 0 : index
    %c0_103 = arith.constant 0 : index
    %c0_104 = arith.constant 0 : index
    %218 = vector.load %arg9[%c0_102, %c0_103, %c0_104] : memref<1x8x8xf32, #tpu.memory_space<vmem>>, vector<1x8x8xf32>
    %219 = vector.shape_cast %218 : vector<1x8x8xf32> to vector<8x8xf32>
    %220 = vector.shape_cast %217 : vector<8x8xf32> to vector<1x8x8xf32>
    tpu.vector_store %arg9[%c0_102, %c0_103, %c0_104], %220 {strides = array<i32>} : memref<1x8x8xf32, #tpu.memory_space<vmem>>, vector<1x8x8xf32>,
    return
  }
  func.func @transform_0(%arg0: i32) -> (i32, i32, i32) {
    %c0_i32 = arith.constant 0 : i32
    %c0_i32_0 = arith.constant 0 : i32
    %c0_i32_1 = arith.constant 0 : i32
    return %arg0, %c0_i32, %c0_i32_0 : i32, i32, i32
  }
  func.func @transform_1(%arg0: i32) -> (i32, i32, i32) {
    %c0_i32 = arith.constant 0 : i32
    %c0_i32_0 = arith.constant 0 : i32
    %c0_i32_1 = arith.constant 0 : i32
    return %arg0, %c0_i32, %c0_i32_0 : i32, i32, i32
  }
  func.func @transform_2(%arg0: i32) -> (i32, i32, i32) {
    %c0_i32 = arith.constant 0 : i32
    %c0_i32_0 = arith.constant 0 : i32
    %c0_i32_1 = arith.constant 0 : i32
    %c0_i32_2 = arith.constant 0 : i32
    return %c0_i32, %c0_i32_0, %c0_i32_1 : i32, i32, i32
  }
  func.func @transform_3(%arg0: i32) -> (i32, i32, i32) {
    %c0_i32 = arith.constant 0 : i32
    %c0_i32_0 = arith.constant 0 : i32
    %c0_i32_1 = arith.constant 0 : i32
    %c0_i32_2 = arith.constant 0 : i32
    return %c0_i32, %c0_i32_0, %c0_i32_1 : i32, i32, i32
  }
  func.func @transform_4(%arg0: i32) -> (i32, i32, i32) {
    %c0_i32 = arith.constant 0 : i32
    %c0_i32_0 = arith.constant 0 : i32
    %c0_i32_1 = arith.constant 0 : i32
    %c0_i32_2 = arith.constant 0 : i32
    return %c0_i32, %c0_i32_0, %c0_i32_1 : i32, i32, i32
  }
  func.func @transform_5(%arg0: i32) -> (i32, i32) {
    %c0_i32 = arith.constant 0 : i32
    %c0_i32_0 = arith.constant 0 : i32
    %c0_i32_1 = arith.constant 0 : i32
    return %c0_i32, %c0_i32_0 : i32, i32
  }
  func.func @transform_6(%arg0: i32) -> (i32, i32) {
    %c0_i32 = arith.constant 0 : i32
    %c0_i32_0 = arith.constant 0 : i32
    %c0_i32_1 = arith.constant 0 : i32
    return %c0_i32, %c0_i32_0 : i32, i32
  }
  func.func @transform_7(%arg0: i32) -> (i32, i32) {
    %c0_i32 = arith.constant 0 : i32
    %c0_i32_0 = arith.constant 0 : i32
    %c0_i32_1 = arith.constant 0 : i32
    return %c0_i32, %c0_i32_0 : i32, i32
  }
  func.func @transform_8(%arg0: i32) -> (i32, i32, i32) {
    %c0_i32 = arith.constant 0 : i32
    %c0_i32_0 = arith.constant 0 : i32
    %c0_i32_1 = arith.constant 0 : i32
    return %arg0, %c0_i32, %c0_i32_0 : i32, i32, i32
  }
}

</mosaic_0001>

<llo_original>
// kernel: tpu_custom_call.1
$region0: #{tpu_custom_call.1}
  #allocation0 [shape = 'u32[]', space=smem, size = 0x4, offset = 0x4, fixed_abs, tag = 'smem constant byte address 0x4 - core index']
  #allocation1 [shape = 'u32[144,128]{1,0:T(1,128)}', space=vmem, size = 0x12000, scoped, tag = 'internal scratch']
  %s0 = inlined_call_operand.vmem [shape: f32[2,8,16], index: 0, kind: input, shape index: {}]
  %s1 = inlined_call_operand.vmem [shape: f32[2,8,8], index: 1, kind: input, shape index: {}]
  %s2 = inlined_call_operand.vmem [shape: f32[4,16,8], index: 2, kind: input, shape index: {}]
  %s3 = inlined_call_operand.vmem [shape: f32[4,1,8], index: 3, kind: input, shape index: {}]
  %s4 = inlined_call_operand.vmem [shape: f32[4,1,8], index: 4, kind: input, shape index: {}]
  %s5 = inlined_call_operand.vmem [shape: f32[32,8], index: 5, kind: input, shape index: {}]
  %s6 = inlined_call_operand.vmem [shape: f32[1,8], index: 6, kind: input, shape index: {}]
  %s7 = inlined_call_operand.vmem [shape: f32[1,8], index: 7, kind: input, shape index: {}]
  %s8 = inlined_call_operand.hbm [shape: f32[2,8,8], index: 8, kind: output, shape index: {}]
  %s9 = sld [smem:[#allocation0]]
  $region65: #{tpu_custom_call.1} parent=0
    _
  %s11 = ssub.s32 1, %s9
  %s12 = scalar_select 0, %s11, %s9
  $region1: #{tpu_custom_call.1} parent=0
    #allocation2 [shape = 'u8[8192]{0}', space=vmem, size = 0x2000, scoped, tag = 'output window, operand 0']
    #allocation3 [shape = 's32[2]{0}', space=sflag, size = 0x8, scoped, tag = 'scoped memory for tpu_custom_call.1']
    %13 = vsyncpa [#allocation3], 0
    %s14 = scalar_lea.sflag [#allocation3], 1
    %15 = vsyncpa %s14, 0
    loop: start=0, step=1, limit=4
    $region2: #{tpu_custom_call.1} parent=1 // loop_pre_header
      _
    $region3: #{tpu_custom_call.1} parent=1 // loop_header
      %s17 = sphi 0, %s21
      %p18 = scmp.ge.s32.totalorder %s17, 4
      %s27 = sphi 0, %s29
      %s30 = sphi 0, %s27
      %s31 = sphi 0, %s30
      %s47 = sphi 0, %s31
      %s53 = sphi 0, %s55
      %s56 = sphi 0, %s53
      %s57 = sphi 0, %s56
      %s73 = sphi 0, %s57
      %s77 = sphi 0, %s77
      %s79 = sphi 0, %s77
      %s80 = sphi 0, %s79
      %s94 = sphi 0, %s80
      %s98 = sphi 0, %s98
      %s100 = sphi 0, %s98
      %s101 = sphi 0, %s100
      %s115 = sphi 0, %s101
      %s119 = sphi 0, %s119
      %s121 = sphi 0, %s119
      %s122 = sphi 0, %s121
      %s136 = sphi 0, %s122
      %s140 = sphi 0, %s140
      %s142 = sphi 0, %s140
      %s143 = sphi 0, %s142
      %s157 = sphi 0, %s143
      %s161 = sphi 0, %s161
      %s163 = sphi 0, %s161
      %s164 = sphi 0, %s163
      %s178 = sphi 0, %s164
      %s182 = sphi 0, %s182
      %s184 = sphi 0, %s182
      %s185 = sphi 0, %s184
      %s199 = sphi 0, %s185
      %s205 = sphi 0, %s207
      %s208 = sphi 0, %s205
      %s209 = sphi 0, %s208
      %s225 = sphi 0, %s209
    $region4: #{tpu_custom_call.1} parent=1 // loop_header_branch
      %20 = sbr.rel (%p18) target = $region8
    $region5: #{tpu_custom_call.1} parent=1 // loop_body
      %s22 = ssub.s32 %s17, 1
      %s23 = ssub.s32 %s17, 2
      %s24 = sadd.s32 %s17, 1
      %s25 = ssub.s32 %s17, %s24
      %p26 = scmp.eq.s32.totalorder %s25, 0
      %s28 = sadd.s32 %s27, 1
      %s29 = scalar_select %p26, %s27, %s28
      %p32 = pneg %p26
      %p33 = scmp.eq.s32.totalorder %s17, 1
      %p34 = por %p32, %p33
      %p35 = scmp.ne.s32.totalorder %s27, %s30
      %p36 = scmp.eq.s32.totalorder %s17, 0
      %p37 = por %p35, %p36
      %p38 = scmp.ne.s32.totalorder %s27, %s30
      %p39 = scmp.eq.s32.totalorder %s22, 1
      %p40 = por %p38, %p39
      %p41 = scmp.ne.s32.totalorder %s30, %s31
      %p42 = scmp.eq.s32.totalorder %s22, 0
      %p43 = por %p41, %p42
      %p44 = scmp.ne.s32.totalorder %s30, %s31
      %p45 = scmp.eq.s32.totalorder %s23, 1
      %p46 = por %p44, %p45
      %p48 = scmp.ne.s32.totalorder %s31, %s47
      %p49 = scmp.eq.s32.totalorder %s23, 0
      %p50 = por %p48, %p49
      %s51 = ssub.s32 %s17, %s24
      %p52 = scmp.eq.s32.totalorder %s51, 0
      %s54 = sadd.s32 %s53, 1
      %s55 = scalar_select %p52, %s53, %s54
      %p58 = pneg %p52
      %p59 = scmp.eq.s32.totalorder %s17, 1
      %p60 = por %p58, %p59
      %p61 = scmp.ne.s32.totalorder %s53, %s56
      %p62 = scmp.eq.s32.totalorder %s17, 0
      %p63 = por %p61, %p62
      %p64 = scmp.ne.s32.totalorder %s53, %s56
      %p65 = scmp.eq.s32.totalorder %s22, 1
      %p66 = por %p64, %p65
      %p67 = scmp.ne.s32.totalorder %s56, %s57
      %p68 = scmp.eq.s32.totalorder %s22, 0
      %p69 = por %p67, %p68
      %p70 = scmp.ne.s32.totalorder %s56, %s57
      %p71 = scmp.eq.s32.totalorder %s23, 1
      %p72 = por %p70, %p71
      %p74 = scmp.ne.s32.totalorder %s57, %s73
      %p75 = scmp.eq.s32.totalorder %s23, 0
      %p76 = por %p74, %p75
      %s78 = sadd.s32 %s77, 1
      %p81 = scmp.eq.s32.totalorder %s17, 1
      %p82 = scmp.ne.s32.totalorder %s77, %s79
      %p83 = scmp.eq.s32.totalorder %s17, 0
      %p84 = por %p82, %p83
      %p85 = scmp.ne.s32.totalorder %s77, %s79
      %p86 = scmp.eq.s32.totalorder %s22, 1
      %p87 = por %p85, %p86
      %p88 = scmp.ne.s32.totalorder %s79, %s80
      %p89 = scmp.eq.s32.totalorder %s22, 0
      %p90 = por %p88, %p89
      %p91 = scmp.ne.s32.totalorder %s79, %s80
      %p92 = scmp.eq.s32.totalorder %s23, 1
      %p93 = por %p91, %p92
      %p95 = scmp.ne.s32.totalorder %s80, %s94
      %p96 = scmp.eq.s32.totalorder %s23, 0
      %p97 = por %p95, %p96
      %s99 = sadd.s32 %s98, 1
      %p102 = scmp.eq.s32.totalorder %s17, 1
      %p103 = scmp.ne.s32.totalorder %s98, %s100
      %p104 = scmp.eq.s32.totalorder %s17, 0
      %p105 = por %p103, %p104
      %p106 = scmp.ne.s32.totalorder %s98, %s100
      %p107 = scmp.eq.s32.totalorder %s22, 1
      %p108 = por %p106, %p107
      %p109 = scmp.ne.s32.totalorder %s100, %s101
      %p110 = scmp.eq.s32.totalorder %s22, 0
      %p111 = por %p109, %p110
      %p112 = scmp.ne.s32.totalorder %s100, %s101
      %p113 = scmp.eq.s32.totalorder %s23, 1
      %p114 = por %p112, %p113
      %p116 = scmp.ne.s32.totalorder %s101, %s115
      %p117 = scmp.eq.s32.totalorder %s23, 0
      %p118 = por %p116, %p117
      %s120 = sadd.s32 %s119, 1
      %p123 = scmp.eq.s32.totalorder %s17, 1
      %p124 = scmp.ne.s32.totalorder %s119, %s121
      %p125 = scmp.eq.s32.totalorder %s17, 0
      %p126 = por %p124, %p125
      %p127 = scmp.ne.s32.totalorder %s119, %s121
      %p128 = scmp.eq.s32.totalorder %s22, 1
      %p129 = por %p127, %p128
      %p130 = scmp.ne.s32.totalorder %s121, %s122
      %p131 = scmp.eq.s32.totalorder %s22, 0
      %p132 = por %p130, %p131
      %p133 = scmp.ne.s32.totalorder %s121, %s122
      %p134 = scmp.eq.s32.totalorder %s23, 1
      %p135 = por %p133, %p134
      %p137 = scmp.ne.s32.totalorder %s122, %s136
      %p138 = scmp.eq.s32.totalorder %s23, 0
      %p139 = por %p137, %p138
      %s141 = sadd.s32 %s140, 1
      %p144 = scmp.eq.s32.totalorder %s17, 1
      %p145 = scmp.ne.s32.totalorder %s140, %s142
      %p146 = scmp.eq.s32.totalorder %s17, 0
      %p147 = por %p145, %p146
      %p148 = scmp.ne.s32.totalorder %s140, %s142
      %p149 = scmp.eq.s32.totalorder %s22, 1
      %p150 = por %p148, %p149
      %p151 = scmp.ne.s32.totalorder %s142, %s143
      %p152 = scmp.eq.s32.totalorder %s22, 0
      %p153 = por %p151, %p152
      %p154 = scmp.ne.s32.totalorder %s142, %s143
      %p155 = scmp.eq.s32.totalorder %s23, 1
      %p156 = por %p154, %p155
      %p158 = scmp.ne.s32.totalorder %s143, %s157
      %p159 = scmp.eq.s32.totalorder %s23, 0
      %p160 = por %p158, %p159
      %s162 = sadd.s32 %s161, 1
      %p165 = scmp.eq.s32.totalorder %s17, 1
      %p166 = scmp.ne.s32.totalorder %s161, %s163
      %p167 = scmp.eq.s32.totalorder %s17, 0
      %p168 = por %p166, %p167
      %p169 = scmp.ne.s32.totalorder %s161, %s163
      %p170 = scmp.eq.s32.totalorder %s22, 1
      %p171 = por %p169, %p170
      %p172 = scmp.ne.s32.totalorder %s163, %s164
      %p173 = scmp.eq.s32.totalorder %s22, 0
      %p174 = por %p172, %p173
      %p175 = scmp.ne.s32.totalorder %s163, %s164
      %p176 = scmp.eq.s32.totalorder %s23, 1
      %p177 = por %p175, %p176
      %p179 = scmp.ne.s32.totalorder %s164, %s178
      %p180 = scmp.eq.s32.totalorder %s23, 0
      %p181 = por %p179, %p180
      %s183 = sadd.s32 %s182, 1
      %p186 = scmp.eq.s32.totalorder %s17, 1
      %p187 = scmp.ne.s32.totalorder %s182, %s184
      %p188 = scmp.eq.s32.totalorder %s17, 0
      %p189 = por %p187, %p188
      %p190 = scmp.ne.s32.totalorder %s182, %s184
      %p191 = scmp.eq.s32.totalorder %s22, 1
      %p192 = por %p190, %p191
      %p193 = scmp.ne.s32.totalorder %s184, %s185
      %p194 = scmp.eq.s32.totalorder %s22, 0
      %p195 = por %p193, %p194
      %p196 = scmp.ne.s32.totalorder %s184, %s185
      %p197 = scmp.eq.s32.totalorder %s23, 1
      %p198 = por %p196, %p197
      %p200 = scmp.ne.s32.totalorder %s185, %s199
      %p201 = scmp.eq.s32.totalorder %s23, 0
      %p202 = por %p200, %p201
      %s203 = ssub.s32 %s17, %s24
      %p204 = scmp.eq.s32.totalorder %s203, 0
      %s206 = sadd.s32 %s205, 1
      %s207 = scalar_select %p204, %s205, %s206
      %p210 = pneg %p204
      %p211 = scmp.eq.s32.totalorder %s17, 1
      %p212 = por %p210, %p211
      %p213 = scmp.ne.s32.totalorder %s205, %s208
      %p214 = scmp.eq.s32.totalorder %s17, 0
      %p215 = por %p213, %p214
      %p216 = scmp.ne.s32.totalorder %s205, %s208
      %p217 = scmp.eq.s32.totalorder %s22, 1
      %p218 = por %p216, %p217
      %p219 = scmp.ne.s32.totalorder %s208, %s209
      %p220 = scmp.eq.s32.totalorder %s22, 0
      %p221 = por %p219, %p220
      %p222 = scmp.ne.s32.totalorder %s208, %s209
      %p223 = scmp.eq.s32.totalorder %s23, 1
      %p224 = por %p222, %p223
      %p226 = scmp.ne.s32.totalorder %s209, %s225
      %p227 = scmp.eq.s32.totalorder %s23, 0
      %p228 = por %p226, %p227
      %p229 = scmp.le.s32.totalorder 1, %s17
      %p230 = scmp.lt.s32.totalorder %s17, 3
      %p231 = pnand %p229, %p230
      %p232 = pneg %p231
      // Predicated region
      $region9: #{tpu_custom_call.1} parent=5 // pred_check
        _
      $region10: #{tpu_custom_call.1} parent=5 // pred_check_branch
        %234 = sbr.rel (%p231) target = $region12
      $region11: #{tpu_custom_call.1} parent=5 // pred_region
        %s235 = ssub.s32 %s17, 1
        // Predicated region
        $region13: #{tpu_custom_call.1} parent=11 // pred_check
          %p236 = pneg %p90
        $region14: #{tpu_custom_call.1} parent=11 // pred_check_branch
          %238 = sbr.rel (%p236) target = $region16
        $region15: #{tpu_custom_call.1} parent=11 // pred_region
          _
        $region16: #{tpu_custom_call.1} parent=11 // pred_fallthru
          _
        // Predicated region
        $region17: #{tpu_custom_call.1} parent=11 // pred_check
          %p239 = pneg %p111
        $region18: #{tpu_custom_call.1} parent=11 // pred_check_branch
          %241 = sbr.rel (%p239) target = $region20
        $region19: #{tpu_custom_call.1} parent=11 // pred_region
          _
        $region20: #{tpu_custom_call.1} parent=11 // pred_fallthru
          _
        // Predicated region
        $region21: #{tpu_custom_call.1} parent=11 // pred_check
          %p242 = pneg %p132
        $region22: #{tpu_custom_call.1} parent=11 // pred_check_branch
          %244 = sbr.rel (%p242) target = $region24
        $region23: #{tpu_custom_call.1} parent=11 // pred_region
          _
        $region24: #{tpu_custom_call.1} parent=11 // pred_fallthru
          _
        // Predicated region
        $region25: #{tpu_custom_call.1} parent=11 // pred_check
          %p245 = pneg %p153
        $region26: #{tpu_custom_call.1} parent=11 // pred_check_branch
          %247 = sbr.rel (%p245) target = $region28
        $region27: #{tpu_custom_call.1} parent=11 // pred_region
          _
        $region28: #{tpu_custom_call.1} parent=11 // pred_fallthru
          _
        // Predicated region
        $region29: #{tpu_custom_call.1} parent=11 // pred_check
          %p248 = pneg %p174
        $region30: #{tpu_custom_call.1} parent=11 // pred_check_branch
          %250 = sbr.rel (%p248) target = $region32
        $region31: #{tpu_custom_call.1} parent=11 // pred_region
          _
        $region32: #{tpu_custom_call.1} parent=11 // pred_fallthru
          _
        // Predicated region
        $region33: #{tpu_custom_call.1} parent=11 // pred_check
          %p251 = pneg %p195
        $region34: #{tpu_custom_call.1} parent=11 // pred_check_branch
          %253 = sbr.rel (%p251) target = $region36
        $region35: #{tpu_custom_call.1} parent=11 // pred_region
          _
        $region36: #{tpu_custom_call.1} parent=11 // pred_fallthru
          _
      $region12: #{tpu_custom_call.1} parent=5 // pred_fallthru
        _
      %p254 = scmp.lt.s32.totalorder %s17, 2
      // Predicated region
      $region37: #{tpu_custom_call.1} parent=5 // pred_check
        %p255 = pneg %p254
      $region38: #{tpu_custom_call.1} parent=5 // pred_check_branch
        %257 = sbr.rel (%p255) target = $region40
      $region39: #{tpu_custom_call.1} parent=5 // pred_region
        // Predicated region
        $region41: #{tpu_custom_call.1} parent=39 // pred_check
          %p258 = pneg %p37
        $region42: #{tpu_custom_call.1} parent=39 // pred_check_branch
          %260 = sbr.rel (%p258) target = $region44
        $region43: #{tpu_custom_call.1} parent=39 // pred_region
          %p261 = scmp.lt.s32.totalorder %s17, 1
          %s262 = scalar_select %p261, %s17, 1
          %s263 = smul.addr %s262, 8
          %s264 = scalar_lea.vmem %s0, %s263
        $region44: #{tpu_custom_call.1} parent=39 // pred_fallthru
          _
        // Predicated region
        $region45: #{tpu_custom_call.1} parent=39 // pred_check
          %p265 = pneg %p63
        $region46: #{tpu_custom_call.1} parent=39 // pred_check_branch
          %267 = sbr.rel (%p265) target = $region48
        $region47: #{tpu_custom_call.1} parent=39 // pred_region
          %p268 = scmp.lt.s32.totalorder %s17, 1
          %s269 = scalar_select %p268, %s17, 1
          %s270 = smul.addr %s269, 8
          %s271 = scalar_lea.vmem %s1, %s270
        $region48: #{tpu_custom_call.1} parent=39 // pred_fallthru
          _
      $region40: #{tpu_custom_call.1} parent=5 // pred_fallthru
        _
      %p272 = scmp.le.s32.totalorder 1, %s17
      %p273 = scmp.lt.s32.totalorder %s17, 3
      %p274 = pnand %p272, %p273
      %p275 = pneg %p274
      // Predicated region
      $region49: #{tpu_custom_call.1} parent=5 // pred_check
        _
      $region50: #{tpu_custom_call.1} parent=5 // pred_check_branch
        %277 = sbr.rel (%p274) target = $region52
      $region51: #{tpu_custom_call.1} parent=5 // pred_region
        %s278 = ssub.s32 %s17, 1
        %p279 = scmp.lt.s32.totalorder %s22, 1
        %s280 = scalar_select %p279, %s22, 1
        %s281 = smul.addr %s280, 8
        %s282 = scalar_lea.vmem %s0, %s281
        %p283 = pneg %p43
        %p284 = pneg %p40
        %p285 = scmp.lt.s32.totalorder %s22, 1
        %s286 = scalar_select %p285, %s22, 1
        %s287 = smul.addr %s286, 8
        %s288 = scalar_lea.vmem %s1, %s287
        %p289 = pneg %p69
        %p290 = pneg %p66
        %p291 = pneg %p90
        %p292 = pneg %p87
        %p293 = pneg %p111
        %p294 = pneg %p108
        %p295 = pneg %p132
        %p296 = pneg %p129
        %p297 = pneg %p153
        %p298 = pneg %p150
        %p299 = pneg %p174
        %p300 = pneg %p171
        %p301 = pneg %p195
        %p302 = pneg %p192
        %p303 = pneg %p221
        %p304 = pneg %p218
        %s305 = sand.u32 %s208, 1
        %s306 = scalar_lea.sflag [#allocation3], %s305
        %s307 = sand.u32 %s208, 1
        %s308 = smul.addr %s307, 8
        %s309 = scalar_lea.vmem [#allocation2], %s308
        %p310 = scmp.lt.s32.totalorder %s22, 1
        %s311 = scalar_select %p310, %s22, 1
        %s312 = smul.addr %s311, 8
        %s313 = scalar_lea.vmem %s0, %s312
        %p314 = scmp.lt.s32.totalorder %s22, 1
        %s315 = scalar_select %p314, %s22, 1
        %s316 = smul.addr %s315, 8
        %s317 = scalar_lea.vmem %s1, %s316
        %v318 = vld [vmem:[%s313] sm:$0xff]
        %v319 = vld [vmem:[%s317] sm:$0xff]
        %v320 = vld [vmem:[%s2] sm:$0xff]
        %v321 = vld [vmem:[%s2 + $0x8] sm:$0xff]
        %v322 = vld [vmem:[%s3] sm:$0x1]
        %v323 = vld [vmem:[%s4] sm:$0x1]
        %vm324 = vcmask 130048
        %v326 = vsel %vm324, %v318, 0
        %328 = vmatprep.subr.mxu0 0.0
        %329 = vmatpush1.msra.mxu0 %v320
        %330 = vmatprep.subr.mxu0 0.0
        %331 = vmatpush1.msra.mxu0 %v321
        %332 = vmatprep.subr.mxu0 0.0
        %333 = vmatpush1.msra.mxu0 0.0
        %334 = vmatprep.subr.mxu0 0.0
        %335 = vmatpush1.msra.mxu0 0.0
        %336 = vmatprep.subr.mxu0 0.0
        %337 = vmatpush1.msra.mxu0 0.0
        %338 = vmatprep.subr.mxu0 0.0
        %339 = vmatpush1.msra.mxu0 0.0
        %340 = vmatprep.subr.mxu0 0.0
        %341 = vmatpush1.msra.mxu0 0.0
        %342 = vmatprep.subr.mxu0 0.0
        %343 = vmatpush1.msra.mxu0 0.0
        %344 = vmatprep.subr.mxu0 0.0
        %345 = vmatpush1.msra.mxu0 0.0
        %346 = vmatprep.subr.mxu0 0.0
        %347 = vmatpush1.msra.mxu0 0.0
        %348 = vmatprep.subr.mxu0 0.0
        %349 = vmatpush1.msra.mxu0 0.0
        %350 = vmatprep.subr.mxu0 0.0
        %351 = vmatpush1.msra.mxu0 0.0
        %352 = vmatprep.subr.mxu0 0.0
        %353 = vmatpush1.msra.mxu0 0.0
        %354 = vmatprep.subr.mxu0 0.0
        %355 = vmatpush1.msra.mxu0 0.0
        %356 = vmatprep.subr.mxu0 0.0
        %357 = vmatpush1.msra.mxu0 0.0
        %358 = vmatprep.subr.mxu0 0.0
        %359 = vmatpush1.msra.mxu0 0.0
        %360 = vmatprep.subr.mxu0 0.0
        %361 = vmatpush1.msra.mxu0 0.0
        %362 = vmatprep.subr.mxu0 0.0
        %363 = vmatpush1.msra.mxu0 0.0
        %364 = vmatprep.subr.mxu0 0.0
        %365 = vmatpush1.msra.mxu0 0.0
        %366 = vmatprep.subr.mxu0 0.0
        %367 = vmatpush1.msra.mxu0 0.0
        %368 = vmatprep.subr.mxu0 0.0
        %369 = vmatpush1.msra.mxu0 0.0
        %370 = vmatprep.subr.mxu0 0.0
        %371 = vmatpush1.msra.mxu0 0.0
        %372 = vmatprep.subr.mxu0 0.0
        %373 = vmatpush1.msra.mxu0 0.0
        %374 = vmatprep.subr.mxu0 0.0
        %375 = vmatpush1.msra.mxu0 0.0
        %376 = vmatprep.subr.mxu0 0.0
        %377 = vmatpush1.msra.mxu0 0.0
        %378 = vmatprep.subr.mxu0 0.0
        %379 = vmatpush1.msra.mxu0 0.0
        %380 = vmatprep.subr.mxu0 0.0
        %381 = vmatpush1.msra.mxu0 0.0
        %382 = vmatprep.subr.mxu0 0.0
        %383 = vmatpush1.msra.mxu0 0.0
        %384 = vmatprep.subr.mxu0 0.0
        %385 = vmatpush1.msra.mxu0 0.0
        %386 = vmatprep.subr.mxu0 0.0
        %387 = vmatpush1.msra.mxu0 0.0
        %388 = vmatprep.subr.mxu0 0.0
        %389 = vmatpush1.msra.mxu0 0.0
        %390 = vmatprep.subr.mxu0 0.0
        %391 = vmatpush1.msra.mxu0 0.0
        %392 = vmatprep.mubr.f32.mxu0 0.0
        %393 = vmatmul.mubr.f32.gmra.mrb[0].mxu0 %v326
        %v394 = vpop.f32.mrb[0].mxu0
        %v395 = vadd.f32 0.0, %v394
        %v396 = vpop.f32.mrb[0].mxu0
        %397 = vdwg.mxu0
        %v399 = vlaneseq
        %v400 = vshrl.u32 %v399, 7
        %v401 = vsub.s32 0, %v400
        %v402 = vrot.slane %v322, %v401
        %v404 = vmul.f32 %v395, %v402
        %vm405 = vcmask 64512
        %v406 = vsel %vm405, %v404, 0.0
        %407 = vadd.xlane.f32.xlu0 %v406
        %v408 = vpop.xlane.xlu0 %407
        %v410 = vlaneseq
        %v411 = vshrl.u32 %v410, 7
        %v412 = vsub.s32 0, %v411
        %v413 = vrot.slane %v323, %v412
        %v415 = vmul.f32 %v395, %v413
        %v416 = vsel %vm405, %v415, 0.0
        %417 = vadd.xlane.f32.xlu0 %v416
        %v418 = vpop.xlane.xlu0 %417
        %419 = vxpose.xlu0.b32.start [1/16] %v418, 128
        %420 = vxpose.xlu0.b32.cont [2/16] 0.0, 128
        %421 = vxpose.xlu0.b32.cont [3/16] 0.0, 128
        %422 = vxpose.xlu0.b32.cont [4/16] 0.0, 128
        %423 = vxpose.xlu0.b32.cont [5/16] 0.0, 128
        %424 = vxpose.xlu0.b32.cont [6/16] 0.0, 128
        %425 = vxpose.xlu0.b32.cont [7/16] 0.0, 128
        %426 = vxpose.xlu0.b32.cont [8/16] 0.0, 128
        %427 = vxpose.xlu0.b32.cont [9/16] 0.0, 128
        %428 = vxpose.xlu0.b32.cont [10/16] 0.0, 128
        %429 = vxpose.xlu0.b32.cont [11/16] 0.0, 128
        %430 = vxpose.xlu0.b32.cont [12/16] 0.0, 128
        %431 = vxpose.xlu0.b32.cont [13/16] 0.0, 128
        %432 = vxpose.xlu0.b32.cont [14/16] 0.0, 128
        %433 = vxpose.xlu0.b32.cont [15/16] 0.0, 128
        %434 = vxpose.xlu0.b32.end [16/16] 0.0, 128
        %v435 = vpop.trf.xlu0
        %v436 = vpop.trf.xlu0
        %v437 = vpop.trf.xlu0
        %v438 = vpop.trf.xlu0
        %v439 = vpop.trf.xlu0
        %v440 = vpop.trf.xlu0
        %v441 = vpop.trf.xlu0
        %v442 = vpop.trf.xlu0
        %v443 = vpop.trf.xlu0
        %v444 = vpop.trf.xlu0
        %v445 = vpop.trf.xlu0
        %v446 = vpop.trf.xlu0
        %v447 = vpop.trf.xlu0
        %v448 = vpop.trf.xlu0
        %v449 = vpop.trf.xlu0
        %v450 = vpop.trf.xlu0
        %v451 = vlaneseq
        %v452 = vshrl.u32 %v451, 7
        %v453 = vsub.s32 0, %v452
        %v454 = vrot.slane %v435, %v453
        %v455 = vadd.f32 %v408, %v454
        %vm456 = vcmp.gt.f32.partialorder %v455, 0.0
        %v457 = vmul.f32 %v455, 0.2
        %v458 = vsel %vm456, %v455, %v457
        %vm459 = vcmp.gt.f32.partialorder %v319, 0.0
        %v460 = vsel %vm459, %v458, -1e+12
        %v461 = vsel %vm405, %v460, -inf
        %462 = vmax.xlane.f32.xlu0 %v461
        %v463 = vpop.xlane.xlu0 %462
        %v464 = vsub.f32 %v460, %v463
        %v465 = vmul.f32 %v464, 1.442695
        %v466 = vpow.pop %v465
        %v467 = vsel %vm405, %v466, 0.0
        %468 = vadd.xlane.f32.xlu0 %v467
        %v469 = vpop.xlane.xlu0 %468
        %v470 = vrcp.pop %v469
        %v471 = vmul.f32 %v466, %v470
        %v473 = vsel %vm405, %v471, 0
        %475 = vmatprep.subr.mxu0 0.0
        %476 = vmatpush1.msra.mxu0 %v395
        %477 = vmatprep.subr.mxu0 0.0
        %478 = vmatpush1.msra.mxu0 0.0
        %479 = vmatprep.subr.mxu0 0.0
        %480 = vmatpush1.msra.mxu0 0.0
        %481 = vmatprep.subr.mxu0 0.0
        %482 = vmatpush1.msra.mxu0 0.0
        %483 = vmatprep.subr.mxu0 0.0
        %484 = vmatpush1.msra.mxu0 0.0
        %485 = vmatprep.subr.mxu0 0.0
        %486 = vmatpush1.msra.mxu0 0.0
        %487 = vmatprep.subr.mxu0 0.0
        %488 = vmatpush1.msra.mxu0 0.0
        %489 = vmatprep.subr.mxu0 0.0
        %490 = vmatpush1.msra.mxu0 0.0
        %491 = vmatprep.subr.mxu0 0.0
        %492 = vmatpush1.msra.mxu0 0.0
        %493 = vmatprep.subr.mxu0 0.0
        %494 = vmatpush1.msra.mxu0 0.0
        %495 = vmatprep.subr.mxu0 0.0
        %496 = vmatpush1.msra.mxu0 0.0
        %497 = vmatprep.subr.mxu0 0.0
        %498 = vmatpush1.msra.mxu0 0.0
        %499 = vmatprep.subr.mxu0 0.0
        %500 = vmatpush1.msra.mxu0 0.0
        %501 = vmatprep.subr.mxu0 0.0
        %502 = vmatpush1.msra.mxu0 0.0
        %503 = vmatprep.subr.mxu0 0.0
        %504 = vmatpush1.msra.mxu0 0.0
        %505 = vmatprep.subr.mxu0 0.0
        %506 = vmatpush1.msra.mxu0 0.0
        %507 = vmatprep.subr.mxu0 0.0
        %508 = vmatpush1.msra.mxu0 0.0
        %509 = vmatprep.subr.mxu0 0.0
        %510 = vmatpush1.msra.mxu0 0.0
        %511 = vmatprep.subr.mxu0 0.0
        %512 = vmatpush1.msra.mxu0 0.0
        %513 = vmatprep.subr.mxu0 0.0
        %514 = vmatpush1.msra.mxu0 0.0
        %515 = vmatprep.subr.mxu0 0.0
        %516 = vmatpush1.msra.mxu0 0.0
        %517 = vmatprep.subr.mxu0 0.0
        %518 = vmatpush1.msra.mxu0 0.0
        %519 = vmatprep.subr.mxu0 0.0
        %520 = vmatpush1.msra.mxu0 0.0
        %521 = vmatprep.subr.mxu0 0.0
        %522 = vmatpush1.msra.mxu0 0.0
        %523 = vmatprep.subr.mxu0 0.0
        %524 = vmatpush1.msra.mxu0 0.0
        %525 = vmatprep.subr.mxu0 0.0
        %526 = vmatpush1.msra.mxu0 0.0
        %527 = vmatprep.subr.mxu0 0.0
        %528 = vmatpush1.msra.mxu0 0.0
        %529 = vmatprep.subr.mxu0 0.0
        %530 = vmatpush1.msra.mxu0 0.0
        %531 = vmatprep.subr.mxu0 0.0
        %532 = vmatpush1.msra.mxu0 0.0
        %533 = vmatprep.subr.mxu0 0.0
        %534 = vmatpush1.msra.mxu0 0.0
        %535 = vmatprep.subr.mxu0 0.0
        %536 = vmatpush1.msra.mxu0 0.0
        %537 = vmatprep.subr.mxu0 0.0
        %538 = vmatpush1.msra.mxu0 0.0
        %539 = vmatprep.mubr.f32.mxu0 0.0
        %540 = vmatmul.mubr.f32.gmra.mrb[0].mxu0 %v473
        %v541 = vpop.f32.mrb[0].mxu0
        %v542 = vadd.f32 0.0, %v541
        %v543 = vpop.f32.mrb[0].mxu0
        %544 = vdwg.mxu0
        %v545 = vmax.f32 %v542, 0.0
        %s546 = scalar_lea.vmem %s2, 16
        %v547 = vld [vmem:[%s546] sm:$0xff]
        %v548 = vld [vmem:[%s546 + $0x8] sm:$0xff]
        %s549 = scalar_lea.vmem %s3, 1
        %v550 = vld [vmem:[%s549] sm:$0x1]
        %s551 = scalar_lea.vmem %s4, 1
        %v552 = vld [vmem:[%s551] sm:$0x1]
        %553 = vmatprep.subr.mxu0 0.0
        %554 = vmatpush1.msra.mxu0 %v547
        %555 = vmatprep.subr.mxu0 0.0
        %556 = vmatpush1.msra.mxu0 %v548
        %557 = vmatprep.subr.mxu0 0.0
        %558 = vmatpush1.msra.mxu0 0.0
        %559 = vmatprep.subr.mxu0 0.0
        %560 = vmatpush1.msra.mxu0 0.0
        %561 = vmatprep.subr.mxu0 0.0
        %562 = vmatpush1.msra.mxu0 0.0
        %563 = vmatprep.subr.mxu0 0.0
        %564 = vmatpush1.msra.mxu0 0.0
        %565 = vmatprep.subr.mxu0 0.0
        %566 = vmatpush1.msra.mxu0 0.0
        %567 = vmatprep.subr.mxu0 0.0
        %568 = vmatpush1.msra.mxu0 0.0
        %569 = vmatprep.subr.mxu0 0.0
        %570 = vmatpush1.msra.mxu0 0.0
        %571 = vmatprep.subr.mxu0 0.0
        %572 = vmatpush1.msra.mxu0 0.0
        %573 = vmatprep.subr.mxu0 0.0
        %574 = vmatpush1.msra.mxu0 0.0
        %575 = vmatprep.subr.mxu0 0.0
        %576 = vmatpush1.msra.mxu0 0.0
        %577 = vmatprep.subr.mxu0 0.0
        %578 = vmatpush1.msra.mxu0 0.0
        %579 = vmatprep.subr.mxu0 0.0
        %580 = vmatpush1.msra.mxu0 0.0
        %581 = vmatprep.subr.mxu0 0.0
        %582 = vmatpush1.msra.mxu0 0.0
        %583 = vmatprep.subr.mxu0 0.0
        %584 = vmatpush1.msra.mxu0 0.0
        %585 = vmatprep.subr.mxu0 0.0
        %586 = vmatpush1.msra.mxu0 0.0
        %587 = vmatprep.subr.mxu0 0.0
        %588 = vmatpush1.msra.mxu0 0.0
        %589 = vmatprep.subr.mxu0 0.0
        %590 = vmatpush1.msra.mxu0 0.0
        %591 = vmatprep.subr.mxu0 0.0
        %592 = vmatpush1.msra.mxu0 0.0
        %593 = vmatprep.subr.mxu0 0.0
        %594 = vmatpush1.msra.mxu0 0.0
        %595 = vmatprep.subr.mxu0 0.0
        %596 = vmatpush1.msra.mxu0 0.0
        %597 = vmatprep.subr.mxu0 0.0
        %598 = vmatpush1.msra.mxu0 0.0
        %599 = vmatprep.subr.mxu0 0.0
        %600 = vmatpush1.msra.mxu0 0.0
        %601 = vmatprep.subr.mxu0 0.0
        %602 = vmatpush1.msra.mxu0 0.0
        %603 = vmatprep.subr.mxu0 0.0
        %604 = vmatpush1.msra.mxu0 0.0
        %605 = vmatprep.subr.mxu0 0.0
        %606 = vmatpush1.msra.mxu0 0.0
        %607 = vmatprep.subr.mxu0 0.0
        %608 = vmatpush1.msra.mxu0 0.0
        %609 = vmatprep.subr.mxu0 0.0
        %610 = vmatpush1.msra.mxu0 0.0
        %611 = vmatprep.subr.mxu0 0.0
        %612 = vmatpush1.msra.mxu0 0.0
        %613 = vmatprep.subr.mxu0 0.0
        %614 = vmatpush1.msra.mxu0 0.0
        %615 = vmatprep.subr.mxu0 0.0
        %616 = vmatpush1.msra.mxu0 0.0
        %617 = vmatprep.mubr.f32.mxu0 0.0
        %618 = vmatmul.mubr.f32.gmra.mrb[0].mxu0 %v326
        %v619 = vpop.f32.mrb[0].mxu0
        %v620 = vadd.f32 0.0, %v619
        %v621 = vpop.f32.mrb[0].mxu0
        %622 = vdwg.mxu0
        %v624 = vlaneseq
        %v625 = vshrl.u32 %v624, 7
        %v626 = vsub.s32 0, %v625
        %v627 = vrot.slane %v550, %v626
        %v629 = vmul.f32 %v620, %v627
        %v630 = vsel %vm405, %v629, 0.0
        %631 = vadd.xlane.f32.xlu0 %v630
        %v632 = vpop.xlane.xlu0 %631
        %v634 = vlaneseq
        %v635 = vshrl.u32 %v634, 7
        %v636 = vsub.s32 0, %v635
        %v637 = vrot.slane %v552, %v636
        %v639 = vmul.f32 %v620, %v637
        %v640 = vsel %vm405, %v639, 0.0
        %641 = vadd.xlane.f32.xlu0 %v640
        %v642 = vpop.xlane.xlu0 %641
        %643 = vxpose.xlu0.b32.start [1/16] %v642, 128
        %644 = vxpose.xlu0.b32.cont [2/16] 0.0, 128
        %645 = vxpose.xlu0.b32.cont [3/16] 0.0, 128
        %646 = vxpose.xlu0.b32.cont [4/16] 0.0, 128
        %647 = vxpose.xlu0.b32.cont [5/16] 0.0, 128
        %648 = vxpose.xlu0.b32.cont [6/16] 0.0, 128
        %649 = vxpose.xlu0.b32.cont [7/16] 0.0, 128
        %650 = vxpose.xlu0.b32.cont [8/16] 0.0, 128
        %651 = vxpose.xlu0.b32.cont [9/16] 0.0, 128
        %652 = vxpose.xlu0.b32.cont [10/16] 0.0, 128
        %653 = vxpose.xlu0.b32.cont [11/16] 0.0, 128
        %654 = vxpose.xlu0.b32.cont [12/16] 0.0, 128
        %655 = vxpose.xlu0.b32.cont [13/16] 0.0, 128
        %656 = vxpose.xlu0.b32.cont [14/16] 0.0, 128
        %657 = vxpose.xlu0.b32.cont [15/16] 0.0, 128
        %658 = vxpose.xlu0.b32.end [16/16] 0.0, 128
        %v659 = vpop.trf.xlu0
        %v660 = vpop.trf.xlu0
        %v661 = vpop.trf.xlu0
        %v662 = vpop.trf.xlu0
        %v663 = vpop.trf.xlu0
        %v664 = vpop.trf.xlu0
        %v665 = vpop.trf.xlu0
        %v666 = vpop.trf.xlu0
        %v667 = vpop.trf.xlu0
        %v668 = vpop.trf.xlu0
        %v669 = vpop.trf.xlu0
        %v670 = vpop.trf.xlu0
        %v671 = vpop.trf.xlu0
        %v672 = vpop.trf.xlu0
        %v673 = vpop.trf.xlu0
        %v674 = vpop.trf.xlu0
        %v675 = vlaneseq
        %v676 = vshrl.u32 %v675, 7
        %v677 = vsub.s32 0, %v676
        %v678 = vrot.slane %v659, %v677
        %v679 = vadd.f32 %v632, %v678
        %vm680 = vcmp.gt.f32.partialorder %v679, 0.0
        %v681 = vmul.f32 %v679, 0.2
        %v682 = vsel %vm680, %v679, %v681
        %v683 = vsel %vm459, %v682, -1e+12
        %v684 = vsel %vm405, %v683, -inf
        %685 = vmax.xlane.f32.xlu0 %v684
        %v686 = vpop.xlane.xlu0 %685
        %v687 = vsub.f32 %v683, %v686
        %v688 = vmul.f32 %v687, 1.442695
        %v689 = vpow.pop %v688
        %v690 = vsel %vm405, %v689, 0.0
        %691 = vadd.xlane.f32.xlu0 %v690
        %v692 = vpop.xlane.xlu0 %691
        %v693 = vrcp.pop %v692
        %v694 = vmul.f32 %v689, %v693
        %v696 = vsel %vm405, %v694, 0
        %698 = vmatprep.subr.mxu0 0.0
        %699 = vmatpush1.msra.mxu0 %v620
        %700 = vmatprep.subr.mxu0 0.0
        %701 = vmatpush1.msra.mxu0 0.0
        %702 = vmatprep.subr.mxu0 0.0
        %703 = vmatpush1.msra.mxu0 0.0
        %704 = vmatprep.subr.mxu0 0.0
        %705 = vmatpush1.msra.mxu0 0.0
        %706 = vmatprep.subr.mxu0 0.0
        %707 = vmatpush1.msra.mxu0 0.0
        %708 = vmatprep.subr.mxu0 0.0
        %709 = vmatpush1.msra.mxu0 0.0
        %710 = vmatprep.subr.mxu0 0.0
        %711 = vmatpush1.msra.mxu0 0.0
        %712 = vmatprep.subr.mxu0 0.0
        %713 = vmatpush1.msra.mxu0 0.0
        %714 = vmatprep.subr.mxu0 0.0
        %715 = vmatpush1.msra.mxu0 0.0
        %716 = vmatprep.subr.mxu0 0.0
        %717 = vmatpush1.msra.mxu0 0.0
        %718 = vmatprep.subr.mxu0 0.0
        %719 = vmatpush1.msra.mxu0 0.0
        %720 = vmatprep.subr.mxu0 0.0
        %721 = vmatpush1.msra.mxu0 0.0
        %722 = vmatprep.subr.mxu0 0.0
        %723 = vmatpush1.msra.mxu0 0.0
        %724 = vmatprep.subr.mxu0 0.0
        %725 = vmatpush1.msra.mxu0 0.0
        %726 = vmatprep.subr.mxu0 0.0
        %727 = vmatpush1.msra.mxu0 0.0
        %728 = vmatprep.subr.mxu0 0.0
        %729 = vmatpush1.msra.mxu0 0.0
        %730 = vmatprep.subr.mxu0 0.0
        %731 = vmatpush1.msra.mxu0 0.0
        %732 = vmatprep.subr.mxu0 0.0
        %733 = vmatpush1.msra.mxu0 0.0
        %734 = vmatprep.subr.mxu0 0.0
        %735 = vmatpush1.msra.mxu0 0.0
        %736 = vmatprep.subr.mxu0 0.0
        %737 = vmatpush1.msra.mxu0 0.0
        %738 = vmatprep.subr.mxu0 0.0
        %739 = vmatpush1.msra.mxu0 0.0
        %740 = vmatprep.subr.mxu0 0.0
        %741 = vmatpush1.msra.mxu0 0.0
        %742 = vmatprep.subr.mxu0 0.0
        %743 = vmatpush1.msra.mxu0 0.0
        %744 = vmatprep.subr.mxu0 0.0
        %745 = vmatpush1.msra.mxu0 0.0
        %746 = vmatprep.subr.mxu0 0.0
        %747 = vmatpush1.msra.mxu0 0.0
        %748 = vmatprep.subr.mxu0 0.0
        %749 = vmatpush1.msra.mxu0 0.0
        %750 = vmatprep.subr.mxu0 0.0
        %751 = vmatpush1.msra.mxu0 0.0
        %752 = vmatprep.subr.mxu0 0.0
        %753 = vmatpush1.msra.mxu0 0.0
        %754 = vmatprep.subr.mxu0 0.0
        %755 = vmatpush1.msra.mxu0 0.0
        %756 = vmatprep.subr.mxu0 0.0
        %757 = vmatpush1.msra.mxu0 0.0
        %758 = vmatprep.subr.mxu0 0.0
        %759 = vmatpush1.msra.mxu0 0.0
        %760 = vmatprep.subr.mxu0 0.0
        %761 = vmatpush1.msra.mxu0 0.0
        %762 = vmatprep.mubr.f32.mxu0 0.0
        %763 = vmatmul.mubr.f32.gmra.mrb[0].mxu0 %v696
        %v764 = vpop.f32.mrb[0].mxu0
        %v765 = vadd.f32 0.0, %v764
        %v766 = vpop.f32.mrb[0].mxu0
        %767 = vdwg.mxu0
        %v768 = vmax.f32 %v765, 0.0
        %s769 = scalar_lea.vmem %s2, 32
        %v770 = vld [vmem:[%s769] sm:$0xff]
        %v771 = vld [vmem:[%s769 + $0x8] sm:$0xff]
        %s772 = scalar_lea.vmem %s3, 2
        %v773 = vld [vmem:[%s772] sm:$0x1]
        %s774 = scalar_lea.vmem %s4, 2
        %v775 = vld [vmem:[%s774] sm:$0x1]
        %776 = vmatprep.subr.mxu0 0.0
        %777 = vmatpush1.msra.mxu0 %v770
        %778 = vmatprep.subr.mxu0 0.0
        %779 = vmatpush1.msra.mxu0 %v771
        %780 = vmatprep.subr.mxu0 0.0
        %781 = vmatpush1.msra.mxu0 0.0
        %782 = vmatprep.subr.mxu0 0.0
        %783 = vmatpush1.msra.mxu0 0.0
        %784 = vmatprep.subr.mxu0 0.0
        %785 = vmatpush1.msra.mxu0 0.0
        %786 = vmatprep.subr.mxu0 0.0
        %787 = vmatpush1.msra.mxu0 0.0
        %788 = vmatprep.subr.mxu0 0.0
        %789 = vmatpush1.msra.mxu0 0.0
        %790 = vmatprep.subr.mxu0 0.0
        %791 = vmatpush1.msra.mxu0 0.0
        %792 = vmatprep.subr.mxu0 0.0
        %793 = vmatpush1.msra.mxu0 0.0
        %794 = vmatprep.subr.mxu0 0.0
        %795 = vmatpush1.msra.mxu0 0.0
        %796 = vmatprep.subr.mxu0 0.0
        %797 = vmatpush1.msra.mxu0 0.0
        %798 = vmatprep.subr.mxu0 0.0
        %799 = vmatpush1.msra.mxu0 0.0
        %800 = vmatprep.subr.mxu0 0.0
        %801 = vmatpush1.msra.mxu0 0.0
        %802 = vmatprep.subr.mxu0 0.0
        %803 = vmatpush1.msra.mxu0 0.0
        %804 = vmatprep.subr.mxu0 0.0
        %805 = vmatpush1.msra.mxu0 0.0
        %806 = vmatprep.subr.mxu0 0.0
        %807 = vmatpush1.msra.mxu0 0.0
        %808 = vmatprep.subr.mxu0 0.0
        %809 = vmatpush1.msra.mxu0 0.0
        %810 = vmatprep.subr.mxu0 0.0
        %811 = vmatpush1.msra.mxu0 0.0
        %812 = vmatprep.subr.mxu0 0.0
        %813 = vmatpush1.msra.mxu0 0.0
        %814 = vmatprep.subr.mxu0 0.0
        %815 = vmatpush1.msra.mxu0 0.0
        %816 = vmatprep.subr.mxu0 0.0
        %817 = vmatpush1.msra.mxu0 0.0
        %818 = vmatprep.subr.mxu0 0.0
        %819 = vmatpush1.msra.mxu0 0.0
        %820 = vmatprep.subr.mxu0 0.0
        %821 = vmatpush1.msra.mxu0 0.0
        %822 = vmatprep.subr.mxu0 0.0
        %823 = vmatpush1.msra.mxu0 0.0
        %824 = vmatprep.subr.mxu0 0.0
        %825 = vmatpush1.msra.mxu0 0.0
        %826 = vmatprep.subr.mxu0 0.0
        %827 = vmatpush1.msra.mxu0 0.0
        %828 = vmatprep.subr.mxu0 0.0
        %829 = vmatpush1.msra.mxu0 0.0
        %830 = vmatprep.subr.mxu0 0.0
        %831 = vmatpush1.msra.mxu0 0.0
        %832 = vmatprep.subr.mxu0 0.0
        %833 = vmatpush1.msra.mxu0 0.0
        %834 = vmatprep.subr.mxu0 0.0
        %835 = vmatpush1.msra.mxu0 0.0
        %836 = vmatprep.subr.mxu0 0.0
        %837 = vmatpush1.msra.mxu0 0.0
        %838 = vmatprep.subr.mxu0 0.0
        %839 = vmatpush1.msra.mxu0 0.0
        %840 = vmatprep.mubr.f32.mxu0 0.0
        %841 = vmatmul.mubr.f32.gmra.mrb[0].mxu0 %v326
        %v842 = vpop.f32.mrb[0].mxu0
        %v843 = vadd.f32 0.0, %v842
        %v844 = vpop.f32.mrb[0].mxu0
        %845 = vdwg.mxu0
        %v847 = vlaneseq
        %v848 = vshrl.u32 %v847, 7
        %v849 = vsub.s32 0, %v848
        %v850 = vrot.slane %v773, %v849
        %v852 = vmul.f32 %v843, %v850
        %v853 = vsel %vm405, %v852, 0.0
        %854 = vadd.xlane.f32.xlu0 %v853
        %v855 = vpop.xlane.xlu0 %854
        %v857 = vlaneseq
        %v858 = vshrl.u32 %v857, 7
        %v859 = vsub.s32 0, %v858
        %v860 = vrot.slane %v775, %v859
        %v862 = vmul.f32 %v843, %v860
        %v863 = vsel %vm405, %v862, 0.0
        %864 = vadd.xlane.f32.xlu0 %v863
        %v865 = vpop.xlane.xlu0 %864
        %866 = vxpose.xlu0.b32.start [1/16] %v865, 128
        %867 = vxpose.xlu0.b32.cont [2/16] 0.0, 128
        %868 = vxpose.xlu0.b32.cont [3/16] 0.0, 128
        %869 = vxpose.xlu0.b32.cont [4/16] 0.0, 128
        %870 = vxpose.xlu0.b32.cont [5/16] 0.0, 128
        %871 = vxpose.xlu0.b32.cont [6/16] 0.0, 128
        %872 = vxpose.xlu0.b32.cont [7/16] 0.0, 128
        %873 = vxpose.xlu0.b32.cont [8/16] 0.0, 128
        %874 = vxpose.xlu0.b32.cont [9/16] 0.0, 128
        %875 = vxpose.xlu0.b32.cont [10/16] 0.0, 128
        %876 = vxpose.xlu0.b32.cont [11/16] 0.0, 128
        %877 = vxpose.xlu0.b32.cont [12/16] 0.0, 128
        %878 = vxpose.xlu0.b32.cont [13/16] 0.0, 128
        %879 = vxpose.xlu0.b32.cont [14/16] 0.0, 128
        %880 = vxpose.xlu0.b32.cont [15/16] 0.0, 128
        %881 = vxpose.xlu0.b32.end [16/16] 0.0, 128
        %v882 = vpop.trf.xlu0
        %v883 = vpop.trf.xlu0
        %v884 = vpop.trf.xlu0
        %v885 = vpop.trf.xlu0
        %v886 = vpop.trf.xlu0
        %v887 = vpop.trf.xlu0
        %v888 = vpop.trf.xlu0
        %v889 = vpop.trf.xlu0
        %v890 = vpop.trf.xlu0
        %v891 = vpop.trf.xlu0
        %v892 = vpop.trf.xlu0
        %v893 = vpop.trf.xlu0
        %v894 = vpop.trf.xlu0
        %v895 = vpop.trf.xlu0
        %v896 = vpop.trf.xlu0
        %v897 = vpop.trf.xlu0
        %v898 = vlaneseq
        %v899 = vshrl.u32 %v898, 7
        %v900 = vsub.s32 0, %v899
        %v901 = vrot.slane %v882, %v900
        %v902 = vadd.f32 %v855, %v901
        %vm903 = vcmp.gt.f32.partialorder %v902, 0.0
        %v904 = vmul.f32 %v902, 0.2
        %v905 = vsel %vm903, %v902, %v904
        %v906 = vsel %vm459, %v905, -1e+12
        %v907 = vsel %vm405, %v906, -inf
        %908 = vmax.xlane.f32.xlu0 %v907
        %v909 = vpop.xlane.xlu0 %908
        %v910 = vsub.f32 %v906, %v909
        %v911 = vmul.f32 %v910, 1.442695
        %v912 = vpow.pop %v911
        %v913 = vsel %vm405, %v912, 0.0
        %914 = vadd.xlane.f32.xlu0 %v913
        %v915 = vpop.xlane.xlu0 %914
        %v916 = vrcp.pop %v915
        %v917 = vmul.f32 %v912, %v916
        %v919 = vsel %vm405, %v917, 0
        %921 = vmatprep.subr.mxu0 0.0
        %922 = vmatpush1.msra.mxu0 %v843
        %923 = vmatprep.subr.mxu0 0.0
        %924 = vmatpush1.msra.mxu0 0.0
        %925 = vmatprep.subr.mxu0 0.0
        %926 = vmatpush1.msra.mxu0 0.0
        %927 = vmatprep.subr.mxu0 0.0
        %928 = vmatpush1.msra.mxu0 0.0
        %929 = vmatprep.subr.mxu0 0.0
        %930 = vmatpush1.msra.mxu0 0.0
        %931 = vmatprep.subr.mxu0 0.0
        %932 = vmatpush1.msra.mxu0 0.0
        %933 = vmatprep.subr.mxu0 0.0
        %934 = vmatpush1.msra.mxu0 0.0
        %935 = vmatprep.subr.mxu0 0.0
        %936 = vmatpush1.msra.mxu0 0.0
        %937 = vmatprep.subr.mxu0 0.0
        %938 = vmatpush1.msra.mxu0 0.0
        %939 = vmatprep.subr.mxu0 0.0
        %940 = vmatpush1.msra.mxu0 0.0
        %941 = vmatprep.subr.mxu0 0.0
        %942 = vmatpush1.msra.mxu0 0.0
        %943 = vmatprep.subr.mxu0 0.0
        %944 = vmatpush1.msra.mxu0 0.0
        %945 = vmatprep.subr.mxu0 0.0
        %946 = vmatpush1.msra.mxu0 0.0
        %947 = vmatprep.subr.mxu0 0.0
        %948 = vmatpush1.msra.mxu0 0.0
        %949 = vmatprep.subr.mxu0 0.0
        %950 = vmatpush1.msra.mxu0 0.0
        %951 = vmatprep.subr.mxu0 0.0
        %952 = vmatpush1.msra.mxu0 0.0
        %953 = vmatprep.subr.mxu0 0.0
        %954 = vmatpush1.msra.mxu0 0.0
        %955 = vmatprep.subr.mxu0 0.0
        %956 = vmatpush1.msra.mxu0 0.0
        %957 = vmatprep.subr.mxu0 0.0
        %958 = vmatpush1.msra.mxu0 0.0
        %959 = vmatprep.subr.mxu0 0.0
        %960 = vmatpush1.msra.mxu0 0.0
        %961 = vmatprep.subr.mxu0 0.0
        %962 = vmatpush1.msra.mxu0 0.0
        %963 = vmatprep.subr.mxu0 0.0
        %964 = vmatpush1.msra.mxu0 0.0
        %965 = vmatprep.subr.mxu0 0.0
        %966 = vmatpush1.msra.mxu0 0.0
        %967 = vmatprep.subr.mxu0 0.0
        %968 = vmatpush1.msra.mxu0 0.0
        %969 = vmatprep.subr.mxu0 0.0
        %970 = vmatpush1.msra.mxu0 0.0
        %971 = vmatprep.subr.mxu0 0.0
        %972 = vmatpush1.msra.mxu0 0.0
        %973 = vmatprep.subr.mxu0 0.0
        %974 = vmatpush1.msra.mxu0 0.0
        %975 = vmatprep.subr.mxu0 0.0
        %976 = vmatpush1.msra.mxu0 0.0
        %977 = vmatprep.subr.mxu0 0.0
        %978 = vmatpush1.msra.mxu0 0.0
        %979 = vmatprep.subr.mxu0 0.0
        %980 = vmatpush1.msra.mxu0 0.0
        %981 = vmatprep.subr.mxu0 0.0
        %982 = vmatpush1.msra.mxu0 0.0
        %983 = vmatprep.subr.mxu0 0.0
        %984 = vmatpush1.msra.mxu0 0.0
        %985 = vmatprep.mubr.f32.mxu0 0.0
        %986 = vmatmul.mubr.f32.gmra.mrb[0].mxu0 %v919
        %v987 = vpop.f32.mrb[0].mxu0
        %v988 = vadd.f32 0.0, %v987
        %v989 = vpop.f32.mrb[0].mxu0
        %990 = vdwg.mxu0
        %v991 = vmax.f32 %v988, 0.0
        %s992 = scalar_lea.vmem %s2, 48
        %v993 = vld [vmem:[%s992] sm:$0xff]
        %v994 = vld [vmem:[%s992 + $0x8] sm:$0xff]
        %s995 = scalar_lea.vmem %s3, 3
        %v996 = vld [vmem:[%s995] sm:$0x1]
        %s997 = scalar_lea.vmem %s4, 3
        %v998 = vld [vmem:[%s997] sm:$0x1]
        %999 = vmatprep.subr.mxu0 0.0
        %1000 = vmatpush1.msra.mxu0 %v993
        %1001 = vmatprep.subr.mxu0 0.0
        %1002 = vmatpush1.msra.mxu0 %v994
        %1003 = vmatprep.subr.mxu0 0.0
        %1004 = vmatpush1.msra.mxu0 0.0
        %1005 = vmatprep.subr.mxu0 0.0
        %1006 = vmatpush1.msra.mxu0 0.0
        %1007 = vmatprep.subr.mxu0 0.0
        %1008 = vmatpush1.msra.mxu0 0.0
        %1009 = vmatprep.subr.mxu0 0.0
        %1010 = vmatpush1.msra.mxu0 0.0
        %1011 = vmatprep.subr.mxu0 0.0
        %1012 = vmatpush1.msra.mxu0 0.0
        %1013 = vmatprep.subr.mxu0 0.0
        %1014 = vmatpush1.msra.mxu0 0.0
        %1015 = vmatprep.subr.mxu0 0.0
        %1016 = vmatpush1.msra.mxu0 0.0
        %1017 = vmatprep.subr.mxu0 0.0
        %1018 = vmatpush1.msra.mxu0 0.0
        %1019 = vmatprep.subr.mxu0 0.0
        %1020 = vmatpush1.msra.mxu0 0.0
        %1021 = vmatprep.subr.mxu0 0.0
        %1022 = vmatpush1.msra.mxu0 0.0
        %1023 = vmatprep.subr.mxu0 0.0
        %1024 = vmatpush1.msra.mxu0 0.0
        %1025 = vmatprep.subr.mxu0 0.0
        %1026 = vmatpush1.msra.mxu0 0.0
        %1027 = vmatprep.subr.mxu0 0.0
        %1028 = vmatpush1.msra.mxu0 0.0
        %1029 = vmatprep.subr.mxu0 0.0
        %1030 = vmatpush1.msra.mxu0 0.0
        %1031 = vmatprep.subr.mxu0 0.0
        %1032 = vmatpush1.msra.mxu0 0.0
        %1033 = vmatprep.subr.mxu0 0.0
        %1034 = vmatpush1.msra.mxu0 0.0
        %1035 = vmatprep.subr.mxu0 0.0
        %1036 = vmatpush1.msra.mxu0 0.0
        %1037 = vmatprep.subr.mxu0 0.0
        %1038 = vmatpush1.msra.mxu0 0.0
        %1039 = vmatprep.subr.mxu0 0.0
        %1040 = vmatpush1.msra.mxu0 0.0
        %1041 = vmatprep.subr.mxu0 0.0
        %1042 = vmatpush1.msra.mxu0 0.0
        %1043 = vmatprep.subr.mxu0 0.0
        %1044 = vmatpush1.msra.mxu0 0.0
        %1045 = vmatprep.subr.mxu0 0.0
        %1046 = vmatpush1.msra.mxu0 0.0
        %1047 = vmatprep.subr.mxu0 0.0
        %1048 = vmatpush1.msra.mxu0 0.0
        %1049 = vmatprep.subr.mxu0 0.0
        %1050 = vmatpush1.msra.mxu0 0.0
        %1051 = vmatprep.subr.mxu0 0.0
        %1052 = vmatpush1.msra.mxu0 0.0
        %1053 = vmatprep.subr.mxu0 0.0
        %1054 = vmatpush1.msra.mxu0 0.0
        %1055 = vmatprep.subr.mxu0 0.0
        %1056 = vmatpush1.msra.mxu0 0.0
        %1057 = vmatprep.subr.mxu0 0.0
        %1058 = vmatpush1.msra.mxu0 0.0
        %1059 = vmatprep.subr.mxu0 0.0
        %1060 = vmatpush1.msra.mxu0 0.0
        %1061 = vmatprep.subr.mxu0 0.0
        %1062 = vmatpush1.msra.mxu0 0.0
        %1063 = vmatprep.mubr.f32.mxu0 0.0
        %1064 = vmatmul.mubr.f32.gmra.mrb[0].mxu0 %v326
        %v1065 = vpop.f32.mrb[0].mxu0
        %v1066 = vadd.f32 0.0, %v1065
        %v1067 = vpop.f32.mrb[0].mxu0
        %1068 = vdwg.mxu0
        %v1070 = vlaneseq
        %v1071 = vshrl.u32 %v1070, 7
        %v1072 = vsub.s32 0, %v1071
        %v1073 = vrot.slane %v996, %v1072
        %v1075 = vmul.f32 %v1066, %v1073
        %v1076 = vsel %vm405, %v1075, 0.0
        %1077 = vadd.xlane.f32.xlu0 %v1076
        %v1078 = vpop.xlane.xlu0 %1077
        %v1080 = vlaneseq
        %v1081 = vshrl.u32 %v1080, 7
        %v1082 = vsub.s32 0, %v1081
        %v1083 = vrot.slane %v998, %v1082
        %v1085 = vmul.f32 %v1066, %v1083
        %v1086 = vsel %vm405, %v1085, 0.0
        %1087 = vadd.xlane.f32.xlu0 %v1086
        %v1088 = vpop.xlane.xlu0 %1087
        %1089 = vxpose.xlu0.b32.start [1/16] %v1088, 128
        %1090 = vxpose.xlu0.b32.cont [2/16] 0.0, 128
        %1091 = vxpose.xlu0.b32.cont [3/16] 0.0, 128
        %1092 = vxpose.xlu0.b32.cont [4/16] 0.0, 128
        %1093 = vxpose.xlu0.b32.cont [5/16] 0.0, 128
        %1094 = vxpose.xlu0.b32.cont [6/16] 0.0, 128
        %1095 = vxpose.xlu0.b32.cont [7/16] 0.0, 128
        %1096 = vxpose.xlu0.b32.cont [8/16] 0.0, 128
        %1097 = vxpose.xlu0.b32.cont [9/16] 0.0, 128
        %1098 = vxpose.xlu0.b32.cont [10/16] 0.0, 128
        %1099 = vxpose.xlu0.b32.cont [11/16] 0.0, 128
        %1100 = vxpose.xlu0.b32.cont [12/16] 0.0, 128
        %1101 = vxpose.xlu0.b32.cont [13/16] 0.0, 128
        %1102 = vxpose.xlu0.b32.cont [14/16] 0.0, 128
        %1103 = vxpose.xlu0.b32.cont [15/16] 0.0, 128
        %1104 = vxpose.xlu0.b32.end [16/16] 0.0, 128
        %v1105 = vpop.trf.xlu0
        %v1106 = vpop.trf.xlu0
        %v1107 = vpop.trf.xlu0
        %v1108 = vpop.trf.xlu0
        %v1109 = vpop.trf.xlu0
        %v1110 = vpop.trf.xlu0
        %v1111 = vpop.trf.xlu0
        %v1112 = vpop.trf.xlu0
        %v1113 = vpop.trf.xlu0
        %v1114 = vpop.trf.xlu0
        %v1115 = vpop.trf.xlu0
        %v1116 = vpop.trf.xlu0
        %v1117 = vpop.trf.xlu0
        %v1118 = vpop.trf.xlu0
        %v1119 = vpop.trf.xlu0
        %v1120 = vpop.trf.xlu0
        %v1121 = vlaneseq
        %v1122 = vshrl.u32 %v1121, 7
        %v1123 = vsub.s32 0, %v1122
        %v1124 = vrot.slane %v1105, %v1123
        %v1125 = vadd.f32 %v1078, %v1124
        %vm1126 = vcmp.gt.f32.partialorder %v1125, 0.0
        %v1127 = vmul.f32 %v1125, 0.2
        %v1128 = vsel %vm1126, %v1125, %v1127
        %v1129 = vsel %vm459, %v1128, -1e+12
        %v1130 = vsel %vm405, %v1129, -inf
        %1131 = vmax.xlane.f32.xlu0 %v1130
        %v1132 = vpop.xlane.xlu0 %1131
        %v1133 = vsub.f32 %v1129, %v1132
        %v1134 = vmul.f32 %v1133, 1.442695
        %v1135 = vpow.pop %v1134
        %v1136 = vsel %vm405, %v1135, 0.0
        %1137 = vadd.xlane.f32.xlu0 %v1136
        %v1138 = vpop.xlane.xlu0 %1137
        %v1139 = vrcp.pop %v1138
        %v1140 = vmul.f32 %v1135, %v1139
        %v1142 = vsel %vm405, %v1140, 0
        %1144 = vmatprep.subr.mxu0 0.0
        %1145 = vmatpush1.msra.mxu0 %v1066
        %1146 = vmatprep.subr.mxu0 0.0
        %1147 = vmatpush1.msra.mxu0 0.0
        %1148 = vmatprep.subr.mxu0 0.0
        %1149 = vmatpush1.msra.mxu0 0.0
        %1150 = vmatprep.subr.mxu0 0.0
        %1151 = vmatpush1.msra.mxu0 0.0
        %1152 = vmatprep.subr.mxu0 0.0
        %1153 = vmatpush1.msra.mxu0 0.0
        %1154 = vmatprep.subr.mxu0 0.0
        %1155 = vmatpush1.msra.mxu0 0.0
        %1156 = vmatprep.subr.mxu0 0.0
        %1157 = vmatpush1.msra.mxu0 0.0
        %1158 = vmatprep.subr.mxu0 0.0
        %1159 = vmatpush1.msra.mxu0 0.0
        %1160 = vmatprep.subr.mxu0 0.0
        %1161 = vmatpush1.msra.mxu0 0.0
        %1162 = vmatprep.subr.mxu0 0.0
        %1163 = vmatpush1.msra.mxu0 0.0
        %1164 = vmatprep.subr.mxu0 0.0
        %1165 = vmatpush1.msra.mxu0 0.0
        %1166 = vmatprep.subr.mxu0 0.0
        %1167 = vmatpush1.msra.mxu0 0.0
        %1168 = vmatprep.subr.mxu0 0.0
        %1169 = vmatpush1.msra.mxu0 0.0
        %1170 = vmatprep.subr.mxu0 0.0
        %1171 = vmatpush1.msra.mxu0 0.0
        %1172 = vmatprep.subr.mxu0 0.0
        %1173 = vmatpush1.msra.mxu0 0.0
        %1174 = vmatprep.subr.mxu0 0.0
        %1175 = vmatpush1.msra.mxu0 0.0
        %1176 = vmatprep.subr.mxu0 0.0
        %1177 = vmatpush1.msra.mxu0 0.0
        %1178 = vmatprep.subr.mxu0 0.0
        %1179 = vmatpush1.msra.mxu0 0.0
        %1180 = vmatprep.subr.mxu0 0.0
        %1181 = vmatpush1.msra.mxu0 0.0
        %1182 = vmatprep.subr.mxu0 0.0
        %1183 = vmatpush1.msra.mxu0 0.0
        %1184 = vmatprep.subr.mxu0 0.0
        %1185 = vmatpush1.msra.mxu0 0.0
        %1186 = vmatprep.subr.mxu0 0.0
        %1187 = vmatpush1.msra.mxu0 0.0
        %1188 = vmatprep.subr.mxu0 0.0
        %1189 = vmatpush1.msra.mxu0 0.0
        %1190 = vmatprep.subr.mxu0 0.0
        %1191 = vmatpush1.msra.mxu0 0.0
        %1192 = vmatprep.subr.mxu0 0.0
        %1193 = vmatpush1.msra.mxu0 0.0
        %1194 = vmatprep.subr.mxu0 0.0
        %1195 = vmatpush1.msra.mxu0 0.0
        %1196 = vmatprep.subr.mxu0 0.0
        %1197 = vmatpush1.msra.mxu0 0.0
        %1198 = vmatprep.subr.mxu0 0.0
        %1199 = vmatpush1.msra.mxu0 0.0
        %1200 = vmatprep.subr.mxu0 0.0
        %1201 = vmatpush1.msra.mxu0 0.0
        %1202 = vmatprep.subr.mxu0 0.0
        %1203 = vmatpush1.msra.mxu0 0.0
        %1204 = vmatprep.subr.mxu0 0.0
        %1205 = vmatpush1.msra.mxu0 0.0
        %1206 = vmatprep.subr.mxu0 0.0
        %1207 = vmatpush1.msra.mxu0 0.0
        %1208 = vmatprep.mubr.f32.mxu0 0.0
        %1209 = vmatmul.mubr.f32.gmra.mrb[0].mxu0 %v1142
        %v1210 = vpop.f32.mrb[0].mxu0
        %v1211 = vadd.f32 0.0, %v1210
        %v1212 = vpop.f32.mrb[0].mxu0
        %1213 = vdwg.mxu0
        %v1214 = vmax.f32 %v1211, 0.0
        %1216 = vrot.lane.b32.xlu0 %v768, 8
        %v1217 = vpop.permute.xlu0 %1216
        %1220 = vrot.lane.b32.xlu0 %v991, 16
        %v1221 = vpop.permute.xlu0 %1220
        %1224 = vrot.lane.b32.xlu0 %v1214, 24
        %v1225 = vpop.permute.xlu0 %1224
        %v1227 = vsel %vm405, %v545, %v1217
        %v1228 = vsel %vm324, %v1227, %v1221
        %vm1229 = vcmask 195584
        %v1230 = vsel %vm1229, %v1228, %v1225
        %v1231 = vld [vmem:[%s5] sm:$0xff]
        %v1232 = vld [vmem:[%s5 + $0x8] sm:$0xff]
        %v1233 = vld [vmem:[%s5 + $0x10] sm:$0xff]
        %v1234 = vld [vmem:[%s5 + $0x18] sm:$0xff]
        %v1235 = vld [vmem:[%s6] sm:$0x1]
        %v1236 = vld [vmem:[%s7] sm:$0x1]
        %vm1237 = vcmask 261120
        %v1239 = vsel %vm1237, %v1230, 0
        %1241 = vmatprep.subr.mxu0 0.0
        %1242 = vmatpush1.msra.mxu0 %v1231
        %1243 = vmatprep.subr.mxu0 0.0
        %1244 = vmatpush1.msra.mxu0 %v1232
        %1245 = vmatprep.subr.mxu0 0.0
        %1246 = vmatpush1.msra.mxu0 %v1233
        %1247 = vmatprep.subr.mxu0 0.0
        %1248 = vmatpush1.msra.mxu0 %v1234
        %1249 = vmatprep.subr.mxu0 0.0
        %1250 = vmatpush1.msra.mxu0 0.0
        %1251 = vmatprep.subr.mxu0 0.0
        %1252 = vmatpush1.msra.mxu0 0.0
        %1253 = vmatprep.subr.mxu0 0.0
        %1254 = vmatpush1.msra.mxu0 0.0
        %1255 = vmatprep.subr.mxu0 0.0
        %1256 = vmatpush1.msra.mxu0 0.0
        %1257 = vmatprep.subr.mxu0 0.0
        %1258 = vmatpush1.msra.mxu0 0.0
        %1259 = vmatprep.subr.mxu0 0.0
        %1260 = vmatpush1.msra.mxu0 0.0
        %1261 = vmatprep.subr.mxu0 0.0
        %1262 = vmatpush1.msra.mxu0 0.0
        %1263 = vmatprep.subr.mxu0 0.0
        %1264 = vmatpush1.msra.mxu0 0.0
        %1265 = vmatprep.subr.mxu0 0.0
        %1266 = vmatpush1.msra.mxu0 0.0
        %1267 = vmatprep.subr.mxu0 0.0
        %1268 = vmatpush1.msra.mxu0 0.0
        %1269 = vmatprep.subr.mxu0 0.0
        %1270 = vmatpush1.msra.mxu0 0.0
        %1271 = vmatprep.subr.mxu0 0.0
        %1272 = vmatpush1.msra.mxu0 0.0
        %1273 = vmatprep.subr.mxu0 0.0
        %1274 = vmatpush1.msra.mxu0 0.0
        %1275 = vmatprep.subr.mxu0 0.0
        %1276 = vmatpush1.msra.mxu0 0.0
        %1277 = vmatprep.subr.mxu0 0.0
        %1278 = vmatpush1.msra.mxu0 0.0
        %1279 = vmatprep.subr.mxu0 0.0
        %1280 = vmatpush1.msra.mxu0 0.0
        %1281 = vmatprep.subr.mxu0 0.0
        %1282 = vmatpush1.msra.mxu0 0.0
        %1283 = vmatprep.subr.mxu0 0.0
        %1284 = vmatpush1.msra.mxu0 0.0
        %1285 = vmatprep.subr.mxu0 0.0
        %1286 = vmatpush1.msra.mxu0 0.0
        %1287 = vmatprep.subr.mxu0 0.0
        %1288 = vmatpush1.msra.mxu0 0.0
        %1289 = vmatprep.subr.mxu0 0.0
        %1290 = vmatpush1.msra.mxu0 0.0
        %1291 = vmatprep.subr.mxu0 0.0
        %1292 = vmatpush1.msra.mxu0 0.0
        %1293 = vmatprep.subr.mxu0 0.0
        %1294 = vmatpush1.msra.mxu0 0.0
        %1295 = vmatprep.subr.mxu0 0.0
        %1296 = vmatpush1.msra.mxu0 0.0
        %1297 = vmatprep.subr.mxu0 0.0
        %1298 = vmatpush1.msra.mxu0 0.0
        %1299 = vmatprep.subr.mxu0 0.0
        %1300 = vmatpush1.msra.mxu0 0.0
        %1301 = vmatprep.subr.mxu0 0.0
        %1302 = vmatpush1.msra.mxu0 0.0
        %1303 = vmatprep.subr.mxu0 0.0
        %1304 = vmatpush1.msra.mxu0 0.0
        %1305 = vmatprep.mubr.f32.mxu0 0.0
        %1306 = vmatmul.mubr.f32.gmra.mrb[0].mxu0 %v1239
        %v1307 = vpop.f32.mrb[0].mxu0
        %v1308 = vadd.f32 0.0, %v1307
        %v1309 = vpop.f32.mrb[0].mxu0
        %1310 = vdwg.mxu0
        %v1312 = vlaneseq
        %v1313 = vshrl.u32 %v1312, 7
        %v1314 = vsub.s32 0, %v1313
        %v1315 = vrot.slane %v1235, %v1314
        %v1317 = vmul.f32 %v1308, %v1315
        %v1318 = vsel %vm405, %v1317, 0.0
        %1319 = vadd.xlane.f32.xlu0 %v1318
        %v1320 = vpop.xlane.xlu0 %1319
        %v1322 = vlaneseq
        %v1323 = vshrl.u32 %v1322, 7
        %v1324 = vsub.s32 0, %v1323
        %v1325 = vrot.slane %v1236, %v1324
        %v1327 = vmul.f32 %v1308, %v1325
        %v1328 = vsel %vm405, %v1327, 0.0
        %1329 = vadd.xlane.f32.xlu0 %v1328
        %v1330 = vpop.xlane.xlu0 %1329
        %1331 = vxpose.xlu0.b32.start [1/16] %v1330, 128
        %1332 = vxpose.xlu0.b32.cont [2/16] 0.0, 128
        %1333 = vxpose.xlu0.b32.cont [3/16] 0.0, 128
        %1334 = vxpose.xlu0.b32.cont [4/16] 0.0, 128
        %1335 = vxpose.xlu0.b32.cont [5/16] 0.0, 128
        %1336 = vxpose.xlu0.b32.cont [6/16] 0.0, 128
        %1337 = vxpose.xlu0.b32.cont [7/16] 0.0, 128
        %1338 = vxpose.xlu0.b32.cont [8/16] 0.0, 128
        %1339 = vxpose.xlu0.b32.cont [9/16] 0.0, 128
        %1340 = vxpose.xlu0.b32.cont [10/16] 0.0, 128
        %1341 = vxpose.xlu0.b32.cont [11/16] 0.0, 128
        %1342 = vxpose.xlu0.b32.cont [12/16] 0.0, 128
        %1343 = vxpose.xlu0.b32.cont [13/16] 0.0, 128
        %1344 = vxpose.xlu0.b32.cont [14/16] 0.0, 128
        %1345 = vxpose.xlu0.b32.cont [15/16] 0.0, 128
        %1346 = vxpose.xlu0.b32.end [16/16] 0.0, 128
        %v1347 = vpop.trf.xlu0
        %v1348 = vpop.trf.xlu0
        %v1349 = vpop.trf.xlu0
        %v1350 = vpop.trf.xlu0
        %v1351 = vpop.trf.xlu0
        %v1352 = vpop.trf.xlu0
        %v1353 = vpop.trf.xlu0
        %v1354 = vpop.trf.xlu0
        %v1355 = vpop.trf.xlu0
        %v1356 = vpop.trf.xlu0
        %v1357 = vpop.trf.xlu0
        %v1358 = vpop.trf.xlu0
        %v1359 = vpop.trf.xlu0
        %v1360 = vpop.trf.xlu0
        %v1361 = vpop.trf.xlu0
        %v1362 = vpop.trf.xlu0
        %v1363 = vlaneseq
        %v1364 = vshrl.u32 %v1363, 7
        %v1365 = vsub.s32 0, %v1364
        %v1366 = vrot.slane %v1347, %v1365
        %v1367 = vadd.f32 %v1320, %v1366
        %vm1368 = vcmp.gt.f32.partialorder %v1367, 0.0
        %v1369 = vmul.f32 %v1367, 0.2
        %v1370 = vsel %vm1368, %v1367, %v1369
        %v1371 = vsel %vm459, %v1370, -1e+12
        %v1372 = vsel %vm405, %v1371, -inf
        %1373 = vmax.xlane.f32.xlu0 %v1372
        %v1374 = vpop.xlane.xlu0 %1373
        %v1375 = vsub.f32 %v1371, %v1374
        %v1376 = vmul.f32 %v1375, 1.442695
        %v1377 = vpow.pop %v1376
        %v1378 = vsel %vm405, %v1377, 0.0
        %1379 = vadd.xlane.f32.xlu0 %v1378
        %v1380 = vpop.xlane.xlu0 %1379
        %v1381 = vrcp.pop %v1380
        %v1382 = vmul.f32 %v1377, %v1381
        %v1384 = vsel %vm405, %v1382, 0
        %1386 = vmatprep.subr.mxu0 0.0
        %1387 = vmatpush1.msra.mxu0 %v1308
        %1388 = vmatprep.subr.mxu0 0.0
        %1389 = vmatpush1.msra.mxu0 0.0
        %1390 = vmatprep.subr.mxu0 0.0
        %1391 = vmatpush1.msra.mxu0 0.0
        %1392 = vmatprep.subr.mxu0 0.0
        %1393 = vmatpush1.msra.mxu0 0.0
        %1394 = vmatprep.subr.mxu0 0.0
        %1395 = vmatpush1.msra.mxu0 0.0
        %1396 = vmatprep.subr.mxu0 0.0
        %1397 = vmatpush1.msra.mxu0 0.0
        %1398 = vmatprep.subr.mxu0 0.0
        %1399 = vmatpush1.msra.mxu0 0.0
        %1400 = vmatprep.subr.mxu0 0.0
        %1401 = vmatpush1.msra.mxu0 0.0
        %1402 = vmatprep.subr.mxu0 0.0
        %1403 = vmatpush1.msra.mxu0 0.0
        %1404 = vmatprep.subr.mxu0 0.0
        %1405 = vmatpush1.msra.mxu0 0.0
        %1406 = vmatprep.subr.mxu0 0.0
        %1407 = vmatpush1.msra.mxu0 0.0
        %1408 = vmatprep.subr.mxu0 0.0
        %1409 = vmatpush1.msra.mxu0 0.0
        %1410 = vmatprep.subr.mxu0 0.0
        %1411 = vmatpush1.msra.mxu0 0.0
        %1412 = vmatprep.subr.mxu0 0.0
        %1413 = vmatpush1.msra.mxu0 0.0
        %1414 = vmatprep.subr.mxu0 0.0
        %1415 = vmatpush1.msra.mxu0 0.0
        %1416 = vmatprep.subr.mxu0 0.0
        %1417 = vmatpush1.msra.mxu0 0.0
        %1418 = vmatprep.subr.mxu0 0.0
        %1419 = vmatpush1.msra.mxu0 0.0
        %1420 = vmatprep.subr.mxu0 0.0
        %1421 = vmatpush1.msra.mxu0 0.0
        %1422 = vmatprep.subr.mxu0 0.0
        %1423 = vmatpush1.msra.mxu0 0.0
        %1424 = vmatprep.subr.mxu0 0.0
        %1425 = vmatpush1.msra.mxu0 0.0
        %1426 = vmatprep.subr.mxu0 0.0
        %1427 = vmatpush1.msra.mxu0 0.0
        %1428 = vmatprep.subr.mxu0 0.0
        %1429 = vmatpush1.msra.mxu0 0.0
        %1430 = vmatprep.subr.mxu0 0.0
        %1431 = vmatpush1.msra.mxu0 0.0
        %1432 = vmatprep.subr.mxu0 0.0
        %1433 = vmatpush1.msra.mxu0 0.0
        %1434 = vmatprep.subr.mxu0 0.0
        %1435 = vmatpush1.msra.mxu0 0.0
        %1436 = vmatprep.subr.mxu0 0.0
        %1437 = vmatpush1.msra.mxu0 0.0
        %1438 = vmatprep.subr.mxu0 0.0
        %1439 = vmatpush1.msra.mxu0 0.0
        %1440 = vmatprep.subr.mxu0 0.0
        %1441 = vmatpush1.msra.mxu0 0.0
        %1442 = vmatprep.subr.mxu0 0.0
        %1443 = vmatpush1.msra.mxu0 0.0
        %1444 = vmatprep.subr.mxu0 0.0
        %1445 = vmatpush1.msra.mxu0 0.0
        %1446 = vmatprep.subr.mxu0 0.0
        %1447 = vmatpush1.msra.mxu0 0.0
        %1448 = vmatprep.subr.mxu0 0.0
        %1449 = vmatpush1.msra.mxu0 0.0
        %1450 = vmatprep.mubr.f32.mxu0 0.0
        %1451 = vmatmul.mubr.f32.gmra.mrb[0].mxu0 %v1384
        %v1452 = vpop.f32.mrb[0].mxu0
        %v1453 = vadd.f32 0.0, %v1452
        %v1454 = vpop.f32.mrb[0].mxu0
        %1455 = vdwg.mxu0
        %vm1456 = vcmp.gt.f32.partialorder %v1453, 0.0
        %v1457 = vmin.f32 %v1453, 0.0
        %v1458 = vmul.f32 %v1457, 1.442695
        %v1459 = vpow.pop %v1458
        %v1460 = vsub.f32 %v1459, 1.0
        %v1461 = vsel %vm1456, %v1453, %v1460
        %v1462 = vsel %vm405, %v1461, -inf
        %1463 = vmax.xlane.f32.xlu0 %v1462
        %v1464 = vpop.xlane.xlu0 %1463
        %v1465 = vsub.f32 %v1461, %v1464
        %v1466 = vmul.f32 %v1465, 1.442695
        %v1467 = vpow.pop %v1466
        %v1468 = vsel %vm405, %v1467, 0.0
        %1469 = vadd.xlane.f32.xlu0 %v1468
        %v1470 = vpop.xlane.xlu0 %1469
        %v1471 = vlog2.pop %v1470
        %v1472 = vmul.f32 %v1471, 0.6931472
        %v1473 = vsub.f32 %v1465, %v1472
        %1474 = vst.msk [vmem:[%s309] sm:$0xff] %vm405, %v1473
        %s1475 = sand.u32 %s208, 1
        %s1476 = scalar_lea.sflag [#allocation3], %s1475
        %s1477 = sand.u32 %s208, 1
        %s1478 = smul.addr %s1477, 8
        %s1479 = scalar_lea.vmem [#allocation2], %s1478
        // Predicated region
        $region53: #{tpu_custom_call.1} parent=51 // pred_check
          %p1480 = pneg %p218
        $region54: #{tpu_custom_call.1} parent=51 // pred_check_branch
          %1482 = sbr.rel (%p1480) target = $region56
        $region55: #{tpu_custom_call.1} parent=51 // pred_region
          %s1484 = ssub.s32 128, 128
          %1485 = vsyncadd %s1476, %s1484
          %s1486 = smul.addr %s22, 128
          %s1487 = scalar_lea.hbm %s8, %s1486
          %s1489 = sshll.u32 %s1479, 4
          %s1490 = int_to_ptr.vmem [resolvable:$true] %s1489
          %1492 = dma.vmem_to_hbm [thread:$0]  %s1490, 128, %s1487, %s1476
        $region56: #{tpu_custom_call.1} parent=51 // pred_fallthru
          _
      $region52: #{tpu_custom_call.1} parent=5 // pred_fallthru
        _
      %p1493 = scmp.le.s32.totalorder 2, %s17
      // Predicated region
      $region57: #{tpu_custom_call.1} parent=5 // pred_check
        %p1494 = pneg %p1493
      $region58: #{tpu_custom_call.1} parent=5 // pred_check_branch
        %1496 = sbr.rel (%p1494) target = $region60
      $region59: #{tpu_custom_call.1} parent=5 // pred_region
        %s1497 = ssub.s32 %s17, 2
        // Predicated region
        $region61: #{tpu_custom_call.1} parent=59 // pred_check
          %p1498 = pneg %p224
        $region62: #{tpu_custom_call.1} parent=59 // pred_check_branch
          %1500 = sbr.rel (%p1498) target = $region64
        $region63: #{tpu_custom_call.1} parent=59 // pred_region
          %s1501 = sand.u32 %s209, 1
          %s1502 = scalar_lea.sflag [#allocation3], %s1501
          %s1503 = sand.u32 %s209, 1
          %s1504 = smul.addr %s1503, 8
          %s1505 = scalar_lea.vmem [#allocation2], %s1504
          %1506 = dma.done %s1502, 128
        $region64: #{tpu_custom_call.1} parent=59 // pred_fallthru
          _
      $region60: #{tpu_custom_call.1} parent=5 // pred_fallthru
        _
    $region6: #{tpu_custom_call.1} parent=1 // loop_footer
      %s21 = sadd.s32 1, %s17
    $region7: #{tpu_custom_call.1} parent=1 // loop_footer_branch
      %16 = sbr.rel target = $region3
    $region8: #{tpu_custom_call.1} parent=1 // loop_exit
      _
    %1507 = vsyncpa [#allocation3], 1
    %s1508 = scalar_lea.sflag [#allocation3], 1
    %1509 = vsyncpa %s1508, 1

</llo_original>
